<compile_context>
chip_gen: v6e
topology: v6e:2x2x1
jax: 0.10.0
libtpu: 0.0.40
codegen_flags: <defaults>
</compile_context>

<pallas_src>
import functools

import jax
import jax.numpy as jnp
from jax.experimental import pallas as pl
from jax.experimental.pallas import tpu as pltpu


def _round_up(a: int, b: int) -> int:
    return (a + b - 1) // b * b


def _chch_kernel(n_real, gamma_ref, xq_ref, xkv_ref, o_ref):
    """One (batch b, query-tile i) grid step.

    gamma_ref : SMEM (1,) f32      -- learnable residual scale
    xq_ref    : VMEM (TQ, M)       -- query rows of x (also the residual tile)
    xkv_ref   : VMEM (N_pad, M)    -- full key/value slab for batch b (resident over i)
    o_ref     : VMEM (TQ, M)       -- output tile
    """
    q = xq_ref[...].astype(jnp.float32)        # (TQ, M)   native-dtype DMA, f32 compute
    kv = xkv_ref[...].astype(jnp.float32)      # (N_pad, M)

    # energy = Q @ K^T -> (TQ, N_pad); lane-dense over the key axis (MXU).
    energy = jax.lax.dot_general(
        q, kv, (((1,), (1,)), ((), ())),
        preferred_element_type=jnp.float32,
        precision=jax.lax.Precision.HIGHEST)

    # Row max over the *real* keys only. Padded key rows are zero-filled in HBM, so
    # their energy is exactly 0; mask them out of the max so they cannot win it.
    if energy.shape[-1] != n_real:
        col = jax.lax.broadcasted_iota(jnp.int32, energy.shape, 1)
        energy_for_max = jnp.where(col < n_real, energy, -jnp.inf)
    else:
        energy_for_max = energy
    row_max = jnp.max(energy_for_max, axis=-1, keepdims=True)   # one XLU reduce / tile

    # attention = sigmoid(row_max - energy); exp goes to the EUP slot.
    att = 1.0 / (1.0 + jnp.exp(-(row_max - energy)))            # (TQ, N_pad)
    # (Padded key columns multiply zero value-rows below, so they contribute nothing.)

    out = jnp.dot(att, kv, preferred_element_type=jnp.float32,
                  precision=jax.lax.Precision.HIGHEST)           # (TQ, M)

    gamma = gamma_ref[0]
    o_ref[...] = (gamma * out + q).astype(o_ref.dtype)


def chch_forward(x, gamma, *, tile_q: int = 256):
    """Pallas TPU forward of CHCH_Module.  x: (B, C, H, W); gamma: scalar parameter."""
    B, C, H, W = x.shape
    N = C * H                     # attention axis (matches x.view(B, C*H, -1))
    M = W                         # contraction / value axis

    x_flat = x.reshape(B, N, M)   # keep native dtype; cast happens inside the kernel
    N_pad = _round_up(N, 8)
    TQ = min(tile_q, N_pad)
    N_pad = _round_up(N_pad, TQ)  # grid tiles evenly
    if N_pad != N:
        x_flat = jnp.pad(x_flat, ((0, 0), (0, N_pad - N), (0, 0)))

    gamma_arr = jnp.asarray(gamma, dtype=jnp.float32).reshape((1,))

    itemsize = x_flat.dtype.itemsize
    # VMEM budget: double-buffered K/V slab + q/out tiles + f32 energy temporaries.
    need = (2 * N_pad * M * itemsize          # kv slab, double-buffered
            + 4 * TQ * M * itemsize           # q + out tiles, double-buffered
            + 4 * TQ * N_pad * 4              # energy / attention temporaries (slack)
            + (4 << 20))
    vmem_limit = int(min(max(need, 32 << 20), 64 << 20))

    grid = (B, N_pad // TQ)
    kernel = functools.partial(_chch_kernel, N)

    out = pl.pallas_call(
        kernel,
        out_shape=jax.ShapeDtypeStruct((B, N_pad, M), x.dtype),
        grid=grid,
        in_specs=[
            pl.BlockSpec(memory_space=pltpu.MemorySpace.SMEM),       # gamma scalar
            pl.BlockSpec((None, TQ, M), lambda b, i: (b, i, 0)),     # query / residual tile
            pl.BlockSpec((None, N_pad, M), lambda b, i: (b, 0, 0)),  # per-batch K/V slab
        ],
        out_specs=pl.BlockSpec((None, TQ, M), lambda b, i: (b, i, 0)),
        compiler_params=pltpu.CompilerParams(
            dimension_semantics=("parallel", "parallel"),
            vmem_limit_bytes=vmem_limit),
        cost_estimate=pl.CostEstimate(
            flops=4 * B * N_pad * N_pad * M,
            transcendentals=B * N_pad * N_pad,
            bytes_accessed=3 * B * N_pad * M * itemsize),
    )(gamma_arr, x_flat, x_flat)

    return out[:, :N, :].reshape(B, C, H, W)


def reference(x, gamma):
    """Pure-JAX mirror of the PyTorch forward."""
    B, C, H, W = x.shape
    q = x.reshape(B, C * H, W).astype(jnp.float32)
    energy = jnp.einsum("bnm,bkm->bnk", q, q,
                        precision=jax.lax.Precision.HIGHEST)
    energy_new = jnp.max(energy, axis=-1, keepdims=True) - energy
    att = 1.0 / (1.0 + jnp.exp(-energy_new))
    out = jnp.einsum("bnk,bkm->bnm", att, q,
                     precision=jax.lax.Precision.HIGHEST)
    out = out.reshape(B, C, H, W)
    return (gamma * out + x.astype(jnp.float32)).astype(x.dtype)


if __name__ == "__main__":
    B, C, H, W = 2, 4, 16, 16          # N = C*H = 64, M = W = 16
    key = jax.random.PRNGKey(0)
    x = jax.random.normal(key, (B, C, H, W), dtype=jnp.float32)

    # The module initializes gamma to 0 (output == x); use a nonzero gamma here so
    # the attention path is actually exercised by the correctness check.
    gamma = jnp.float32(0.5)

    y = chch_forward(x, gamma)
    jax.block_until_ready(y)
    assert y.shape == (B, C, H, W)

    y_ref = reference(x, gamma)
    assert jnp.allclose(y, y_ref, atol=1e-4, rtol=1e-4), "mismatch vs reference"

    # gamma = 0 (the module's default init) must reduce to the identity residual.
    y0 = chch_forward(x, jnp.float32(0.0))
    jax.block_until_ready(y0)
    assert jnp.allclose(y0, x, atol=1e-6, rtol=1e-6), "gamma=0 must return x"

    print("KERNEL_OK")
</pallas_src>

<mosaic_0001>
module attributes {stable_mosaic.version = 11 : i64} {
  func.func @_chch_kernel(%arg0: i32, %arg1: i32, %arg2: memref<1xf32, #tpu.memory_space<smem>>, %arg3: memref<1x64x16xf32, #tpu.memory_space<vmem>>, %arg4: memref<1x64x16xf32, #tpu.memory_space<vmem>>, %arg5: memref<1x64x16xf32, #tpu.memory_space<vmem>>) attributes {dimension_semantics = [#tpu.dimension_semantics<parallel>, #tpu.dimension_semantics<parallel>], iteration_bounds = array<i64: 2, 1>, scalar_prefetch = 0 : i64, scratch_operands = 0 : i64, tpu.core_type = #tpu.core_type<tc>, window_params = [{transform_indices = @transform_0, window_bounds = array<i64: 1>}, {transform_indices = @transform_1, window_bounds = array<i64: 1, 64, 16>}, {transform_indices = @transform_2, window_bounds = array<i64: 1, 64, 16>}, {transform_indices = @transform_3, window_bounds = array<i64: 1, 64, 16>}]} {
    %c0 = arith.constant 0 : index
    %c0_0 = arith.constant 0 : index
    %c0_1 = arith.constant 0 : index
    %0 = vector.load %arg3[%c0, %c0_0, %c0_1] : memref<1x64x16xf32, #tpu.memory_space<vmem>>, vector<1x64x16xf32>
    %1 = vector.shape_cast %0 : vector<1x64x16xf32> to vector<64x16xf32>
    %c0_2 = arith.constant 0 : index
    %c0_3 = arith.constant 0 : index
    %c0_4 = arith.constant 0 : index
    %2 = vector.load %arg4[%c0_2, %c0_3, %c0_4] : memref<1x64x16xf32, #tpu.memory_space<vmem>>, vector<1x64x16xf32>
    %3 = vector.shape_cast %2 : vector<1x64x16xf32> to vector<64x16xf32>
    %cst = arith.constant dense<0.000000e+00> : vector<64x64xf32>
    %4 = tpu.matmul %1, %3, %cst {dimension_numbers = #tpu.dot_dimension_numbers<[1], [1], [0], [0], [0, 0, 1, 0], [], []>, precision = #tpu.contract_precision<fp32>} : vector<64x16xf32>, vector<64x16xf32>, vector<64x64xf32> -> vector<64x64xf32>
    %cst_5 = arith.constant dense<0xFF800000> : vector<64xf32>
    %5 = vector.multi_reduction <maximumf>, %4, %cst_5 [1] : vector<64x64xf32> to vector<64xf32>
    %6 = vector.shape_cast %5 : vector<64xf32> to vector<64x1xf32>
    %7 = vector.broadcast %6 : vector<64x1xf32> to vector<64x64xf32>
    %8 = arith.subf %7, %4 : vector<64x64xf32>
    %cst_6 = arith.constant 0.000000e+00 : f32
    %9 = vector.broadcast %cst_6 : f32 to vector<64x64xf32>
    %10 = arith.subf %9, %8 : vector<64x64xf32>
    %11 = math.exp %10 : vector<64x64xf32>
    %cst_7 = arith.constant 1.000000e+00 : f32
    %12 = vector.broadcast %cst_7 : f32 to vector<64x64xf32>
    %13 = arith.addf %12, %11 : vector<64x64xf32>
    %cst_8 = arith.constant 1.000000e+00 : f32
    %14 = vector.broadcast %cst_8 : f32 to vector<64x64xf32>
    %15 = arith.divf %14, %13 : vector<64x64xf32>
    %cst_9 = arith.constant dense<0.000000e+00> : vector<64x16xf32>
    %16 = tpu.matmul %15, %3, %cst_9 {dimension_numbers = #tpu.dot_dimension_numbers<[1], [0], [0], [1], [0, 0, 1, 1], [], []>, precision = #tpu.contract_precision<fp32>} : vector<64x64xf32>, vector<64x16xf32>, vector<64x16xf32> -> vector<64x16xf32>
    %c0_10 = arith.constant 0 : index
    %17 = memref.load %arg2[%c0_10] : memref<1xf32, #tpu.memory_space<smem>>
    %18 = vector.broadcast %17 : f32 to vector<64x16xf32>
    %19 = arith.mulf %18, %16 : vector<64x16xf32>
    %20 = arith.addf %19, %1 : vector<64x16xf32>
    %c0_11 = arith.constant 0 : index
    %c0_12 = arith.constant 0 : index
    %c0_13 = arith.constant 0 : index
    %21 = vector.load %arg5[%c0_11, %c0_12, %c0_13] : memref<1x64x16xf32, #tpu.memory_space<vmem>>, vector<1x64x16xf32>
    %22 = vector.shape_cast %21 : vector<1x64x16xf32> to vector<64x16xf32>
    %23 = vector.shape_cast %20 : vector<64x16xf32> to vector<1x64x16xf32>
    tpu.vector_store %arg5[%c0_11, %c0_12, %c0_13], %23 {strides = array<i32>} : memref<1x64x16xf32, #tpu.memory_space<vmem>>, vector<1x64x16xf32>,
    return
  }
  func.func @transform_0(%arg0: i32, %arg1: i32) -> i32 {
    %c0_i32 = arith.constant 0 : i32
    %c0_i32_0 = arith.constant 0 : i32
    return %c0_i32 : i32
  }
  func.func @transform_1(%arg0: i32, %arg1: i32) -> (i32, i32, i32) {
    %c0_i32 = arith.constant 0 : i32
    %c0_i32_0 = arith.constant 0 : i32
    return %arg0, %arg1, %c0_i32 : i32, i32, i32
  }
  func.func @transform_2(%arg0: i32, %arg1: i32) -> (i32, i32, i32) {
    %c0_i32 = arith.constant 0 : i32
    %c0_i32_0 = arith.constant 0 : i32
    %c0_i32_1 = arith.constant 0 : i32
    return %arg0, %c0_i32, %c0_i32_0 : i32, i32, i32
  }
  func.func @transform_3(%arg0: i32, %arg1: i32) -> (i32, i32, i32) {
    %c0_i32 = arith.constant 0 : i32
    %c0_i32_0 = arith.constant 0 : i32
    return %arg0, %arg1, %c0_i32 : i32, i32, i32
  }
}

</mosaic_0001>

<llo_original>
// kernel: tpu_custom_call.1
$region0: #{tpu_custom_call.1}
  #allocation0 [shape = 'u32[]', space=smem, size = 0x4, offset = 0x4, fixed_abs, tag = 'smem constant byte address 0x4 - core index']
  #allocation1 [shape = 'u32[144,128]{1,0:T(1,128)}', space=vmem, size = 0x12000, scoped, tag = 'internal scratch']
  #allocation2 [shape = 'f32[1]{0:T(128)S(6)}', space=smem, size = 0x200, scoped, tag = 'scoped memory for tpu_custom_call.1']
  %s0 = inlined_call_operand.<no memory space> [shape: f32[1], index: 0, kind: input, shape index: {}]
  %s1 = inlined_call_operand.vmem [shape: f32[2,64,16], index: 1, kind: input, shape index: {}]
  %s2 = inlined_call_operand.vmem [shape: f32[2,64,16], index: 2, kind: input, shape index: {}]
  %s3 = inlined_call_operand.vmem [shape: f32[2,64,16], index: 3, kind: output, shape index: {}]
  %s4 = sld [smem:[#allocation0]]
  $region45: #{tpu_custom_call.1} parent=0
    _
  %s6 = ssub.s32 1, %s4
  %s7 = scalar_select 0, %s6, %s4
  %8 = sst [smem:[#allocation2]] %s0
  loop: start=0, step=1, limit=4
  $region2: #{tpu_custom_call.1} parent=0 // loop_pre_header
    _
  $region3: #{tpu_custom_call.1} parent=0 // loop_header
    %s10 = sphi 0, %s14
    %p11 = scmp.ge.s32.totalorder %s10, 4
    %s17 = sphi 0, %s29
    %s18 = sphi 0, %s25
    %s19 = sphi 0, %s17
    %s20 = sphi 0, %s18
    %s21 = sphi 0, %s19
    %s22 = sphi 0, %s20
    %s30 = sphi 0, %s30
    %s32 = sphi 0, %s30
    %s33 = sphi 0, %s32
    %s47 = sphi 0, %s33
    %s55 = sphi 0, %s57
    %s58 = sphi 0, %s55
    %s59 = sphi 0, %s58
    %s75 = sphi 0, %s59
    %s81 = sphi 0, %s83
    %s84 = sphi 0, %s81
    %s85 = sphi 0, %s84
    %s101 = sphi 0, %s85
    %s109 = sphi 0, %s111
    %s112 = sphi 0, %s109
    %s113 = sphi 0, %s112
    %s129 = sphi 0, %s113
  $region4: #{tpu_custom_call.1} parent=0 // loop_header_branch
    %13 = sbr.rel (%p11) target = $region8
  $region5: #{tpu_custom_call.1} parent=0 // loop_body
    %s15 = ssub.s32 %s10, 1
    %s16 = ssub.s32 %s10, 2
    %s23 = sadd.s32 1, %s18
    %p24 = scmp.ge.s32.totalorder %s23, 1
    %s25 = scalar_select %p24, 0, %s23
    %s26 = sadd.s32 1, %s17
    %s27 = scalar_select %p24, %s26, %s17
    %p28 = scmp.ge.s32.totalorder %s27, 2
    %s29 = scalar_select %p28, 0, %s27
    %s31 = sadd.s32 %s30, 1
    %p34 = scmp.eq.s32.totalorder %s10, 1
    %p35 = scmp.ne.s32.totalorder %s30, %s32
    %p36 = scmp.eq.s32.totalorder %s10, 0
    %p37 = por %p35, %p36
    %p38 = scmp.ne.s32.totalorder %s30, %s32
    %p39 = scmp.eq.s32.totalorder %s15, 1
    %p40 = por %p38, %p39
    %p41 = scmp.ne.s32.totalorder %s32, %s33
    %p42 = scmp.eq.s32.totalorder %s15, 0
    %p43 = por %p41, %p42
    %p44 = scmp.ne.s32.totalorder %s32, %s33
    %p45 = scmp.eq.s32.totalorder %s16, 1
    %p46 = por %p44, %p45
    %p48 = scmp.ne.s32.totalorder %s33, %s47
    %p49 = scmp.eq.s32.totalorder %s16, 0
    %p50 = por %p48, %p49
    %s51 = ssub.s32 %s17, %s29
    %s52 = ssub.s32 %s18, %s25
    %s53 = sor.u32 %s51, %s52
    %p54 = scmp.eq.s32.totalorder %s53, 0
    %s56 = sadd.s32 %s55, 1
    %s57 = scalar_select %p54, %s55, %s56
    %p60 = pneg %p54
    %p61 = scmp.eq.s32.totalorder %s10, 1
    %p62 = por %p60, %p61
    %p63 = scmp.ne.s32.totalorder %s55, %s58
    %p64 = scmp.eq.s32.totalorder %s10, 0
    %p65 = por %p63, %p64
    %p66 = scmp.ne.s32.totalorder %s55, %s58
    %p67 = scmp.eq.s32.totalorder %s15, 1
    %p68 = por %p66, %p67
    %p69 = scmp.ne.s32.totalorder %s58, %s59
    %p70 = scmp.eq.s32.totalorder %s15, 0
    %p71 = por %p69, %p70
    %p72 = scmp.ne.s32.totalorder %s58, %s59
    %p73 = scmp.eq.s32.totalorder %s16, 1
    %p74 = por %p72, %p73
    %p76 = scmp.ne.s32.totalorder %s59, %s75
    %p77 = scmp.eq.s32.totalorder %s16, 0
    %p78 = por %p76, %p77
    %s79 = ssub.s32 %s17, %s29
    %p80 = scmp.eq.s32.totalorder %s79, 0
    %s82 = sadd.s32 %s81, 1
    %s83 = scalar_select %p80, %s81, %s82
    %p86 = pneg %p80
    %p87 = scmp.eq.s32.totalorder %s10, 1
    %p88 = por %p86, %p87
    %p89 = scmp.ne.s32.totalorder %s81, %s84
    %p90 = scmp.eq.s32.totalorder %s10, 0
    %p91 = por %p89, %p90
    %p92 = scmp.ne.s32.totalorder %s81, %s84
    %p93 = scmp.eq.s32.totalorder %s15, 1
    %p94 = por %p92, %p93
    %p95 = scmp.ne.s32.totalorder %s84, %s85
    %p96 = scmp.eq.s32.totalorder %s15, 0
    %p97 = por %p95, %p96
    %p98 = scmp.ne.s32.totalorder %s84, %s85
    %p99 = scmp.eq.s32.totalorder %s16, 1
    %p100 = por %p98, %p99
    %p102 = scmp.ne.s32.totalorder %s85, %s101
    %p103 = scmp.eq.s32.totalorder %s16, 0
    %p104 = por %p102, %p103
    %s105 = ssub.s32 %s17, %s29
    %s106 = ssub.s32 %s18, %s25
    %s107 = sor.u32 %s105, %s106
    %p108 = scmp.eq.s32.totalorder %s107, 0
    %s110 = sadd.s32 %s109, 1
    %s111 = scalar_select %p108, %s109, %s110
    %p114 = pneg %p108
    %p115 = scmp.eq.s32.totalorder %s10, 1
    %p116 = por %p114, %p115
    %p117 = scmp.ne.s32.totalorder %s109, %s112
    %p118 = scmp.eq.s32.totalorder %s10, 0
    %p119 = por %p117, %p118
    %p120 = scmp.ne.s32.totalorder %s109, %s112
    %p121 = scmp.eq.s32.totalorder %s15, 1
    %p122 = por %p120, %p121
    %p123 = scmp.ne.s32.totalorder %s112, %s113
    %p124 = scmp.eq.s32.totalorder %s15, 0
    %p125 = por %p123, %p124
    %p126 = scmp.ne.s32.totalorder %s112, %s113
    %p127 = scmp.eq.s32.totalorder %s16, 1
    %p128 = por %p126, %p127
    %p130 = scmp.ne.s32.totalorder %s113, %s129
    %p131 = scmp.eq.s32.totalorder %s16, 0
    %p132 = por %p130, %p131
    %p133 = scmp.le.s32.totalorder 1, %s10
    %p134 = scmp.lt.s32.totalorder %s10, 3
    %p135 = pnand %p133, %p134
    %p136 = pneg %p135
    // Predicated region
    $region9: #{tpu_custom_call.1} parent=5 // pred_check
      _
    $region10: #{tpu_custom_call.1} parent=5 // pred_check_branch
      %138 = sbr.rel (%p135) target = $region12
    $region11: #{tpu_custom_call.1} parent=5 // pred_region
      %s139 = ssub.s32 %s10, 1
      // Predicated region
      $region13: #{tpu_custom_call.1} parent=11 // pred_check
        %p140 = pneg %p43
      $region14: #{tpu_custom_call.1} parent=11 // pred_check_branch
        %142 = sbr.rel (%p140) target = $region16
      $region15: #{tpu_custom_call.1} parent=11 // pred_region
        _
      $region16: #{tpu_custom_call.1} parent=11 // pred_fallthru
        _
    $region12: #{tpu_custom_call.1} parent=5 // pred_fallthru
      _
    %p143 = scmp.lt.s32.totalorder %s10, 2
    // Predicated region
    $region17: #{tpu_custom_call.1} parent=5 // pred_check
      %p144 = pneg %p143
    $region18: #{tpu_custom_call.1} parent=5 // pred_check_branch
      %146 = sbr.rel (%p144) target = $region20
    $region19: #{tpu_custom_call.1} parent=5 // pred_region
      // Predicated region
      $region21: #{tpu_custom_call.1} parent=19 // pred_check
        %p147 = pneg %p65
      $region22: #{tpu_custom_call.1} parent=19 // pred_check_branch
        %149 = sbr.rel (%p147) target = $region24
      $region23: #{tpu_custom_call.1} parent=19 // pred_region
        %s150 = smul.u32 8, %s18
        %p151 = scmp.lt.s32.totalorder %s17, 1
        %s152 = scalar_select %p151, %s17, 1
        %p153 = scmp.lt.s32.totalorder %s150, 7
        %s154 = scalar_select %p153, %s150, 7
        %s155 = smul.addr %s152, 8
        %s156 = sadd.s32 %s154, %s155
        %s157 = smul.addr %s156, 8
        %s158 = scalar_lea.vmem %s1, %s157
        %s159 = smul.u32 8, %s18
      $region24: #{tpu_custom_call.1} parent=19 // pred_fallthru
        _
      // Predicated region
      $region25: #{tpu_custom_call.1} parent=19 // pred_check
        %p160 = pneg %p91
      $region26: #{tpu_custom_call.1} parent=19 // pred_check_branch
        %162 = sbr.rel (%p160) target = $region28
      $region27: #{tpu_custom_call.1} parent=19 // pred_region
        %p163 = scmp.lt.s32.totalorder %s17, 1
        %s164 = scalar_select %p163, %s17, 1
        %s165 = smul.addr %s164, 8
        %s166 = smul.addr %s165, 8
        %s167 = scalar_lea.vmem %s2, %s166
      $region28: #{tpu_custom_call.1} parent=19 // pred_fallthru
        _
    $region20: #{tpu_custom_call.1} parent=5 // pred_fallthru
      _
    %p168 = scmp.le.s32.totalorder 1, %s10
    %p169 = scmp.lt.s32.totalorder %s10, 3
    %p170 = pnand %p168, %p169
    %p171 = pneg %p170
    // Predicated region
    $region29: #{tpu_custom_call.1} parent=5 // pred_check
      _
    $region30: #{tpu_custom_call.1} parent=5 // pred_check_branch
      %173 = sbr.rel (%p170) target = $region32
    $region31: #{tpu_custom_call.1} parent=5 // pred_region
      %s174 = ssub.s32 %s10, 1
      %p175 = pneg %p43
      %p176 = pneg %p40
      %s177 = smul.u32 8, %s20
      %p178 = scmp.lt.s32.totalorder %s19, 1
      %s179 = scalar_select %p178, %s19, 1
      %p180 = scmp.lt.s32.totalorder %s177, 7
      %s181 = scalar_select %p180, %s177, 7
      %s182 = smul.addr %s179, 8
      %s183 = sadd.s32 %s181, %s182
      %s184 = smul.addr %s183, 8
      %s185 = scalar_lea.vmem %s1, %s184
      %p186 = pneg %p71
      %p187 = pneg %p68
      %p188 = scmp.lt.s32.totalorder %s19, 1
      %s189 = scalar_select %p188, %s19, 1
      %s190 = smul.addr %s189, 8
      %s191 = smul.addr %s190, 8
      %s192 = scalar_lea.vmem %s2, %s191
      %p193 = pneg %p97
      %p194 = pneg %p94
      %p195 = pneg %p125
      %p196 = pneg %p122
      %s197 = smul.u32 8, %s20
      %p198 = scmp.lt.s32.totalorder %s19, 1
      %s199 = scalar_select %p198, %s19, 1
      %p200 = scmp.lt.s32.totalorder %s197, 7
      %s201 = scalar_select %p200, %s197, 7
      %s202 = smul.addr %s199, 8
      %s203 = sadd.s32 %s201, %s202
      %s204 = smul.addr %s203, 8
      %s205 = scalar_lea.vmem %s3, %s204
      %s206 = smul.u32 8, %s20
      %p207 = scmp.lt.s32.totalorder %s19, 1
      %s208 = scalar_select %p207, %s19, 1
      %p209 = scmp.lt.s32.totalorder %s206, 7
      %s210 = scalar_select %p209, %s206, 7
      %s211 = smul.addr %s208, 8
      %s212 = sadd.s32 %s210, %s211
      %s213 = smul.addr %s212, 8
      %s214 = scalar_lea.vmem %s1, %s213
      %s215 = smul.u32 8, %s20
      %p216 = scmp.lt.s32.totalorder %s19, 1
      %s217 = scalar_select %p216, %s19, 1
      %s218 = smul.addr %s217, 8
      %s219 = smul.addr %s218, 8
      %s220 = scalar_lea.vmem %s2, %s219
      %s221 = smul.u32 8, %s20
      %p222 = scmp.lt.s32.totalorder %s19, 1
      %s223 = scalar_select %p222, %s19, 1
      %p224 = scmp.lt.s32.totalorder %s221, 7
      %s225 = scalar_select %p224, %s221, 7
      %s226 = smul.addr %s223, 8
      %s227 = sadd.s32 %s225, %s226
      %s228 = smul.addr %s227, 8
      %s229 = scalar_lea.vmem %s3, %s228
      %s230 = smul.u32 8, %s20
      %v231 = vld [vmem:[%s214] sm:$0xff]
      %v232 = vld [vmem:[%s214 + $0x8] sm:$0xff]
      %v233 = vld [vmem:[%s214 + $0x10] sm:$0xff]
      %v234 = vld [vmem:[%s214 + $0x18] sm:$0xff]
      %v235 = vld [vmem:[%s214 + $0x20] sm:$0xff]
      %v236 = vld [vmem:[%s214 + $0x28] sm:$0xff]
      %v237 = vld [vmem:[%s214 + $0x30] sm:$0xff]
      %v238 = vld [vmem:[%s214 + $0x38] sm:$0xff]
      %v239 = vld [vmem:[%s220] sm:$0xff]
      %v240 = vld [vmem:[%s220 + $0x8] sm:$0xff]
      %v241 = vld [vmem:[%s220 + $0x10] sm:$0xff]
      %v242 = vld [vmem:[%s220 + $0x18] sm:$0xff]
      %v243 = vld [vmem:[%s220 + $0x20] sm:$0xff]
      %v244 = vld [vmem:[%s220 + $0x28] sm:$0xff]
      %v245 = vld [vmem:[%s220 + $0x30] sm:$0xff]
      %v246 = vld [vmem:[%s220 + $0x38] sm:$0xff]
      %vm247 = vcmask 130048
      %v249 = vsel %vm247, %v231, 0
      %v252 = vsel %vm247, %v232, 0
      %v255 = vsel %vm247, %v233, 0
      %v258 = vsel %vm247, %v234, 0
      %v261 = vsel %vm247, %v235, 0
      %v264 = vsel %vm247, %v236, 0
      %v267 = vsel %vm247, %v237, 0
      %v270 = vsel %vm247, %v238, 0
      %v273 = vsel %vm247, %v239, 0
      %v276 = vsel %vm247, %v240, 0
      %v279 = vsel %vm247, %v241, 0
      %v282 = vsel %vm247, %v242, 0
      %v285 = vsel %vm247, %v243, 0
      %v288 = vsel %vm247, %v244, 0
      %v291 = vsel %vm247, %v245, 0
      %v294 = vsel %vm247, %v246, 0
      %296 = vmatprep.subr.mxu0 0.0
      %297 = vmatpush1.xpose.msra.mxu0 0.0
      %298 = vmatprep.subr.mxu0 0.0
      %299 = vmatpush1.xpose.msra.mxu0 0.0
      %300 = vmatprep.subr.mxu0 0.0
      %301 = vmatpush1.xpose.msra.mxu0 0.0
      %302 = vmatprep.subr.mxu0 0.0
      %303 = vmatpush1.xpose.msra.mxu0 0.0
      %304 = vmatprep.subr.mxu0 0.0
      %305 = vmatpush1.xpose.msra.mxu0 0.0
      %306 = vmatprep.subr.mxu0 0.0
      %307 = vmatpush1.xpose.msra.mxu0 0.0
      %308 = vmatprep.subr.mxu0 0.0
      %309 = vmatpush1.xpose.msra.mxu0 0.0
      %310 = vmatprep.subr.mxu0 0.0
      %311 = vmatpush1.xpose.msra.mxu0 0.0
      %312 = vmatprep.subr.mxu0 0.0
      %v313 = vand.u32 %v294, 4294901760
      %314 = vmatpush1.xpose.msra.mxu0 %v313
      %315 = vmatprep.subr.mxu0 0.0
      %v316 = vand.u32 %v291, 4294901760
      %317 = vmatpush1.xpose.msra.mxu0 %v316
      %318 = vmatprep.subr.mxu0 0.0
      %v319 = vand.u32 %v288, 4294901760
      %320 = vmatpush1.xpose.msra.mxu0 %v319
      %321 = vmatprep.subr.mxu0 0.0
      %v322 = vand.u32 %v285, 4294901760
      %323 = vmatpush1.xpose.msra.mxu0 %v322
      %324 = vmatprep.subr.mxu0 0.0
      %v325 = vand.u32 %v282, 4294901760
      %326 = vmatpush1.xpose.msra.mxu0 %v325
      %327 = vmatprep.subr.mxu0 0.0
      %v328 = vand.u32 %v279, 4294901760
      %329 = vmatpush1.xpose.msra.mxu0 %v328
      %330 = vmatprep.subr.mxu0 0.0
      %v331 = vand.u32 %v276, 4294901760
      %332 = vmatpush1.xpose.msra.mxu0 %v331
      %333 = vmatprep.subr.mxu0 0.0
      %v334 = vand.u32 %v273, 4294901760
      %335 = vmatpush1.xpose.msra.mxu0 %v334
      %336 = vmatprep.subr.mxu0 0.0
      %337 = vmatpush2.xpose.msra.mxu0 0.0
      %338 = vmatprep.subr.mxu0 0.0
      %339 = vmatpush2.xpose.msra.mxu0 0.0
      %340 = vmatprep.subr.mxu0 0.0
      %341 = vmatpush2.xpose.msra.mxu0 0.0
      %342 = vmatprep.subr.mxu0 0.0
      %343 = vmatpush2.xpose.msra.mxu0 0.0
      %344 = vmatprep.subr.mxu0 0.0
      %345 = vmatpush2.xpose.msra.mxu0 0.0
      %346 = vmatprep.subr.mxu0 0.0
      %347 = vmatpush2.xpose.msra.mxu0 0.0
      %348 = vmatprep.subr.mxu0 0.0
      %349 = vmatpush2.xpose.msra.mxu0 0.0
      %350 = vmatprep.subr.mxu0 0.0
      %351 = vmatpush2.xpose.msra.mxu0 0.0
      %352 = vmatprep.subr.mxu0 0.0
      %353 = vmatpush2.xpose.msra.mxu0 0.0
      %354 = vmatprep.subr.mxu0 0.0
      %355 = vmatpush2.xpose.msra.mxu0 0.0
      %356 = vmatprep.subr.mxu0 0.0
      %357 = vmatpush2.xpose.msra.mxu0 0.0
      %358 = vmatprep.subr.mxu0 0.0
      %359 = vmatpush2.xpose.msra.mxu0 0.0
      %360 = vmatprep.subr.mxu0 0.0
      %361 = vmatpush2.xpose.msra.mxu0 0.0
      %362 = vmatprep.subr.mxu0 0.0
      %363 = vmatpush2.xpose.msra.mxu0 0.0
      %364 = vmatprep.subr.mxu0 0.0
      %365 = vmatpush2.xpose.msra.mxu0 0.0
      %366 = vmatprep.subr.mxu0 0.0
      %367 = vmatpush2.xpose.msra.mxu0 0.0
      %368 = vmatprep.mubr.f32.mxu0 0.0
      %v369 = vand.u32 %v249, 4294901760
      %v370 = vsub.f32 %v249, %v369
      %v371 = vand.u32 %v370, 4294901760
      %v372 = vsub.f32 %v370, %v371
      %v373 = vand.u32 %v372, 4294901760
      %374 = vmatmul.mubr.f32.gmra.mxu0 %v373
      %v375 = vpop.f32.mrf.mxu0
      %v376 = vadd.f32 0.0, %v375
      %v377 = vpop.f32.mrf.mxu0
      %378 = vmatprep.mubr.f32.mxu0 0.0
      %v379 = vand.u32 %v252, 4294901760
      %v380 = vsub.f32 %v252, %v379
      %v381 = vand.u32 %v380, 4294901760
      %v382 = vsub.f32 %v380, %v381
      %v383 = vand.u32 %v382, 4294901760
      %384 = vmatmul.mubr.f32.gmra.mxu0 %v383
      %v385 = vpop.f32.mrf.mxu0
      %v386 = vadd.f32 0.0, %v385
      %v387 = vpop.f32.mrf.mxu0
      %388 = vmatprep.mubr.f32.mxu0 0.0
      %v389 = vand.u32 %v255, 4294901760
      %v390 = vsub.f32 %v255, %v389
      %v391 = vand.u32 %v390, 4294901760
      %v392 = vsub.f32 %v390, %v391
      %v393 = vand.u32 %v392, 4294901760
      %394 = vmatmul.mubr.f32.gmra.mxu0 %v393
      %v395 = vpop.f32.mrf.mxu0
      %v396 = vadd.f32 0.0, %v395
      %v397 = vpop.f32.mrf.mxu0
      %398 = vmatprep.mubr.f32.mxu0 0.0
      %v399 = vand.u32 %v258, 4294901760
      %v400 = vsub.f32 %v258, %v399
      %v401 = vand.u32 %v400, 4294901760
      %v402 = vsub.f32 %v400, %v401
      %v403 = vand.u32 %v402, 4294901760
      %404 = vmatmul.mubr.f32.gmra.mxu0 %v403
      %v405 = vpop.f32.mrf.mxu0
      %v406 = vadd.f32 0.0, %v405
      %v407 = vpop.f32.mrf.mxu0
      %408 = vmatprep.mubr.f32.mxu0 0.0
      %v409 = vand.u32 %v261, 4294901760
      %v410 = vsub.f32 %v261, %v409
      %v411 = vand.u32 %v410, 4294901760
      %v412 = vsub.f32 %v410, %v411
      %v413 = vand.u32 %v412, 4294901760
      %414 = vmatmul.mubr.f32.gmra.mxu0 %v413
      %v415 = vpop.f32.mrf.mxu0
      %v416 = vadd.f32 0.0, %v415
      %v417 = vpop.f32.mrf.mxu0
      %418 = vmatprep.mubr.f32.mxu0 0.0
      %v419 = vand.u32 %v264, 4294901760
      %v420 = vsub.f32 %v264, %v419
      %v421 = vand.u32 %v420, 4294901760
      %v422 = vsub.f32 %v420, %v421
      %v423 = vand.u32 %v422, 4294901760
      %424 = vmatmul.mubr.f32.gmra.mxu0 %v423
      %v425 = vpop.f32.mrf.mxu0
      %v426 = vadd.f32 0.0, %v425
      %v427 = vpop.f32.mrf.mxu0
      %428 = vmatprep.mubr.f32.mxu0 0.0
      %v429 = vand.u32 %v267, 4294901760
      %v430 = vsub.f32 %v267, %v429
      %v431 = vand.u32 %v430, 4294901760
      %v432 = vsub.f32 %v430, %v431
      %v433 = vand.u32 %v432, 4294901760
      %434 = vmatmul.mubr.f32.gmra.mxu0 %v433
      %v435 = vpop.f32.mrf.mxu0
      %v436 = vadd.f32 0.0, %v435
      %v437 = vpop.f32.mrf.mxu0
      %438 = vmatprep.mubr.f32.mxu0 0.0
      %v439 = vand.u32 %v270, 4294901760
      %v440 = vsub.f32 %v270, %v439
      %v441 = vand.u32 %v440, 4294901760
      %v442 = vsub.f32 %v440, %v441
      %v443 = vand.u32 %v442, 4294901760
      %444 = vmatmul.mubr.f32.gmra.mxu0 %v443
      %v445 = vpop.f32.mrf.mxu0
      %v446 = vadd.f32 0.0, %v445
      %v447 = vpop.f32.mrf.mxu0
      %448 = vdwg.mxu0
      %449 = vmatprep.subr.mxu0 0.0
      %450 = vmatpush1.xpose.msra.mxu0 0.0
      %451 = vmatprep.subr.mxu0 0.0
      %452 = vmatpush1.xpose.msra.mxu0 0.0
      %453 = vmatprep.subr.mxu0 0.0
      %454 = vmatpush1.xpose.msra.mxu0 0.0
      %455 = vmatprep.subr.mxu0 0.0
      %456 = vmatpush1.xpose.msra.mxu0 0.0
      %457 = vmatprep.subr.mxu0 0.0
      %458 = vmatpush1.xpose.msra.mxu0 0.0
      %459 = vmatprep.subr.mxu0 0.0
      %460 = vmatpush1.xpose.msra.mxu0 0.0
      %461 = vmatprep.subr.mxu0 0.0
      %462 = vmatpush1.xpose.msra.mxu0 0.0
      %463 = vmatprep.subr.mxu0 0.0
      %464 = vmatpush1.xpose.msra.mxu0 0.0
      %465 = vmatprep.subr.mxu0 0.0
      %v466 = vand.u32 %v294, 4294901760
      %v467 = vsub.f32 %v294, %v466
      %v468 = vand.u32 %v467, 4294901760
      %v469 = vsub.f32 %v467, %v468
      %v470 = vand.u32 %v469, 4294901760
      %471 = vmatpush1.xpose.msra.mxu0 %v470
      %472 = vmatprep.subr.mxu0 0.0
      %v473 = vand.u32 %v291, 4294901760
      %v474 = vsub.f32 %v291, %v473
      %v475 = vand.u32 %v474, 4294901760
      %v476 = vsub.f32 %v474, %v475
      %v477 = vand.u32 %v476, 4294901760
      %478 = vmatpush1.xpose.msra.mxu0 %v477
      %479 = vmatprep.subr.mxu0 0.0
      %v480 = vand.u32 %v288, 4294901760
      %v481 = vsub.f32 %v288, %v480
      %v482 = vand.u32 %v481, 4294901760
      %v483 = vsub.f32 %v481, %v482
      %v484 = vand.u32 %v483, 4294901760
      %485 = vmatpush1.xpose.msra.mxu0 %v484
      %486 = vmatprep.subr.mxu0 0.0
      %v487 = vand.u32 %v285, 4294901760
      %v488 = vsub.f32 %v285, %v487
      %v489 = vand.u32 %v488, 4294901760
      %v490 = vsub.f32 %v488, %v489
      %v491 = vand.u32 %v490, 4294901760
      %492 = vmatpush1.xpose.msra.mxu0 %v491
      %493 = vmatprep.subr.mxu0 0.0
      %v494 = vand.u32 %v282, 4294901760
      %v495 = vsub.f32 %v282, %v494
      %v496 = vand.u32 %v495, 4294901760
      %v497 = vsub.f32 %v495, %v496
      %v498 = vand.u32 %v497, 4294901760
      %499 = vmatpush1.xpose.msra.mxu0 %v498
      %500 = vmatprep.subr.mxu0 0.0
      %v501 = vand.u32 %v279, 4294901760
      %v502 = vsub.f32 %v279, %v501
      %v503 = vand.u32 %v502, 4294901760
      %v504 = vsub.f32 %v502, %v503
      %v505 = vand.u32 %v504, 4294901760
      %506 = vmatpush1.xpose.msra.mxu0 %v505
      %507 = vmatprep.subr.mxu0 0.0
      %v508 = vand.u32 %v276, 4294901760
      %v509 = vsub.f32 %v276, %v508
      %v510 = vand.u32 %v509, 4294901760
      %v511 = vsub.f32 %v509, %v510
      %v512 = vand.u32 %v511, 4294901760
      %513 = vmatpush1.xpose.msra.mxu0 %v512
      %514 = vmatprep.subr.mxu0 0.0
      %v515 = vand.u32 %v273, 4294901760
      %v516 = vsub.f32 %v273, %v515
      %v517 = vand.u32 %v516, 4294901760
      %v518 = vsub.f32 %v516, %v517
      %v519 = vand.u32 %v518, 4294901760
      %520 = vmatpush1.xpose.msra.mxu0 %v519
      %521 = vmatprep.subr.mxu0 0.0
      %522 = vmatpush2.xpose.msra.mxu0 0.0
      %523 = vmatprep.subr.mxu0 0.0
      %524 = vmatpush2.xpose.msra.mxu0 0.0
      %525 = vmatprep.subr.mxu0 0.0
      %526 = vmatpush2.xpose.msra.mxu0 0.0
      %527 = vmatprep.subr.mxu0 0.0
      %528 = vmatpush2.xpose.msra.mxu0 0.0
      %529 = vmatprep.subr.mxu0 0.0
      %530 = vmatpush2.xpose.msra.mxu0 0.0
      %531 = vmatprep.subr.mxu0 0.0
      %532 = vmatpush2.xpose.msra.mxu0 0.0
      %533 = vmatprep.subr.mxu0 0.0
      %534 = vmatpush2.xpose.msra.mxu0 0.0
      %535 = vmatprep.subr.mxu0 0.0
      %536 = vmatpush2.xpose.msra.mxu0 0.0
      %537 = vmatprep.subr.mxu0 0.0
      %538 = vmatpush2.xpose.msra.mxu0 0.0
      %539 = vmatprep.subr.mxu0 0.0
      %540 = vmatpush2.xpose.msra.mxu0 0.0
      %541 = vmatprep.subr.mxu0 0.0
      %542 = vmatpush2.xpose.msra.mxu0 0.0
      %543 = vmatprep.subr.mxu0 0.0
      %544 = vmatpush2.xpose.msra.mxu0 0.0
      %545 = vmatprep.subr.mxu0 0.0
      %546 = vmatpush2.xpose.msra.mxu0 0.0
      %547 = vmatprep.subr.mxu0 0.0
      %548 = vmatpush2.xpose.msra.mxu0 0.0
      %549 = vmatprep.subr.mxu0 0.0
      %550 = vmatpush2.xpose.msra.mxu0 0.0
      %551 = vmatprep.subr.mxu0 0.0
      %552 = vmatpush2.xpose.msra.mxu0 0.0
      %553 = vmatprep.mubr.f32.mxu0 0.0
      %v554 = vand.u32 %v249, 4294901760
      %555 = vmatmul.mubr.f32.gmra.mxu0 %v554
      %v556 = vpop.f32.mrf.mxu0
      %v557 = vadd.f32 %v376, %v556
      %v558 = vpop.f32.mrf.mxu0
      %559 = vmatprep.mubr.f32.mxu0 0.0
      %v560 = vand.u32 %v252, 4294901760
      %561 = vmatmul.mubr.f32.gmra.mxu0 %v560
      %v562 = vpop.f32.mrf.mxu0
      %v563 = vadd.f32 %v386, %v562
      %v564 = vpop.f32.mrf.mxu0
      %565 = vmatprep.mubr.f32.mxu0 0.0
      %v566 = vand.u32 %v255, 4294901760
      %567 = vmatmul.mubr.f32.gmra.mxu0 %v566
      %v568 = vpop.f32.mrf.mxu0
      %v569 = vadd.f32 %v396, %v568
      %v570 = vpop.f32.mrf.mxu0
      %571 = vmatprep.mubr.f32.mxu0 0.0
      %v572 = vand.u32 %v258, 4294901760
      %573 = vmatmul.mubr.f32.gmra.mxu0 %v572
      %v574 = vpop.f32.mrf.mxu0
      %v575 = vadd.f32 %v406, %v574
      %v576 = vpop.f32.mrf.mxu0
      %577 = vmatprep.mubr.f32.mxu0 0.0
      %v578 = vand.u32 %v261, 4294901760
      %579 = vmatmul.mubr.f32.gmra.mxu0 %v578
      %v580 = vpop.f32.mrf.mxu0
      %v581 = vadd.f32 %v416, %v580
      %v582 = vpop.f32.mrf.mxu0
      %583 = vmatprep.mubr.f32.mxu0 0.0
      %v584 = vand.u32 %v264, 4294901760
      %585 = vmatmul.mubr.f32.gmra.mxu0 %v584
      %v586 = vpop.f32.mrf.mxu0
      %v587 = vadd.f32 %v426, %v586
      %v588 = vpop.f32.mrf.mxu0
      %589 = vmatprep.mubr.f32.mxu0 0.0
      %v590 = vand.u32 %v267, 4294901760
      %591 = vmatmul.mubr.f32.gmra.mxu0 %v590
      %v592 = vpop.f32.mrf.mxu0
      %v593 = vadd.f32 %v436, %v592
      %v594 = vpop.f32.mrf.mxu0
      %595 = vmatprep.mubr.f32.mxu0 0.0
      %v596 = vand.u32 %v270, 4294901760
      %597 = vmatmul.mubr.f32.gmra.mxu0 %v596
      %v598 = vpop.f32.mrf.mxu0
      %v599 = vadd.f32 %v446, %v598
      %v600 = vpop.f32.mrf.mxu0
      %601 = vdwg.mxu0
      %602 = vmatprep.subr.mxu0 0.0
      %603 = vmatpush1.xpose.msra.mxu0 0.0
      %604 = vmatprep.subr.mxu0 0.0
      %605 = vmatpush1.xpose.msra.mxu0 0.0
      %606 = vmatprep.subr.mxu0 0.0
      %607 = vmatpush1.xpose.msra.mxu0 0.0
      %608 = vmatprep.subr.mxu0 0.0
      %609 = vmatpush1.xpose.msra.mxu0 0.0
      %610 = vmatprep.subr.mxu0 0.0
      %611 = vmatpush1.xpose.msra.mxu0 0.0
      %612 = vmatprep.subr.mxu0 0.0
      %613 = vmatpush1.xpose.msra.mxu0 0.0
      %614 = vmatprep.subr.mxu0 0.0
      %615 = vmatpush1.xpose.msra.mxu0 0.0
      %616 = vmatprep.subr.mxu0 0.0
      %617 = vmatpush1.xpose.msra.mxu0 0.0
      %618 = vmatprep.subr.mxu0 0.0
      %v619 = vand.u32 %v294, 4294901760
      %v620 = vsub.f32 %v294, %v619
      %621 = vmatpush1.xpose.msra.mxu0 %v620
      %622 = vmatprep.subr.mxu0 0.0
      %v623 = vand.u32 %v291, 4294901760
      %v624 = vsub.f32 %v291, %v623
      %625 = vmatpush1.xpose.msra.mxu0 %v624
      %626 = vmatprep.subr.mxu0 0.0
      %v627 = vand.u32 %v288, 4294901760
      %v628 = vsub.f32 %v288, %v627
      %629 = vmatpush1.xpose.msra.mxu0 %v628
      %630 = vmatprep.subr.mxu0 0.0
      %v631 = vand.u32 %v285, 4294901760
      %v632 = vsub.f32 %v285, %v631
      %633 = vmatpush1.xpose.msra.mxu0 %v632
      %634 = vmatprep.subr.mxu0 0.0
      %v635 = vand.u32 %v282, 4294901760
      %v636 = vsub.f32 %v282, %v635
      %637 = vmatpush1.xpose.msra.mxu0 %v636
      %638 = vmatprep.subr.mxu0 0.0
      %v639 = vand.u32 %v279, 4294901760
      %v640 = vsub.f32 %v279, %v639
      %641 = vmatpush1.xpose.msra.mxu0 %v640
      %642 = vmatprep.subr.mxu0 0.0
      %v643 = vand.u32 %v276, 4294901760
      %v644 = vsub.f32 %v276, %v643
      %645 = vmatpush1.xpose.msra.mxu0 %v644
      %646 = vmatprep.subr.mxu0 0.0
      %v647 = vand.u32 %v273, 4294901760
      %v648 = vsub.f32 %v273, %v647
      %649 = vmatpush1.xpose.msra.mxu0 %v648
      %650 = vmatprep.subr.mxu0 0.0
      %651 = vmatpush2.xpose.msra.mxu0 0.0
      %652 = vmatprep.subr.mxu0 0.0
      %653 = vmatpush2.xpose.msra.mxu0 0.0
      %654 = vmatprep.subr.mxu0 0.0
      %655 = vmatpush2.xpose.msra.mxu0 0.0
      %656 = vmatprep.subr.mxu0 0.0
      %657 = vmatpush2.xpose.msra.mxu0 0.0
      %658 = vmatprep.subr.mxu0 0.0
      %659 = vmatpush2.xpose.msra.mxu0 0.0
      %660 = vmatprep.subr.mxu0 0.0
      %661 = vmatpush2.xpose.msra.mxu0 0.0
      %662 = vmatprep.subr.mxu0 0.0
      %663 = vmatpush2.xpose.msra.mxu0 0.0
      %664 = vmatprep.subr.mxu0 0.0
      %665 = vmatpush2.xpose.msra.mxu0 0.0
      %666 = vmatprep.subr.mxu0 0.0
      %667 = vmatpush2.xpose.msra.mxu0 0.0
      %668 = vmatprep.subr.mxu0 0.0
      %669 = vmatpush2.xpose.msra.mxu0 0.0
      %670 = vmatprep.subr.mxu0 0.0
      %671 = vmatpush2.xpose.msra.mxu0 0.0
      %672 = vmatprep.subr.mxu0 0.0
      %673 = vmatpush2.xpose.msra.mxu0 0.0
      %674 = vmatprep.subr.mxu0 0.0
      %675 = vmatpush2.xpose.msra.mxu0 0.0
      %676 = vmatprep.subr.mxu0 0.0
      %677 = vmatpush2.xpose.msra.mxu0 0.0
      %678 = vmatprep.subr.mxu0 0.0
      %679 = vmatpush2.xpose.msra.mxu0 0.0
      %680 = vmatprep.subr.mxu0 0.0
      %681 = vmatpush2.xpose.msra.mxu0 0.0
      %682 = vmatprep.mubr.f32.mxu0 0.0
      %v683 = vand.u32 %v249, 4294901760
      %v684 = vsub.f32 %v249, %v683
      %685 = vmatmul.mubr.f32.gmra.mxu0 %v684
      %v686 = vpop.f32.mrf.mxu0
      %v687 = vadd.f32 %v557, %v686
      %v688 = vpop.f32.mrf.mxu0
      %689 = vmatprep.mubr.f32.mxu0 0.0
      %v690 = vand.u32 %v252, 4294901760
      %v691 = vsub.f32 %v252, %v690
      %692 = vmatmul.mubr.f32.gmra.mxu0 %v691
      %v693 = vpop.f32.mrf.mxu0
      %v694 = vadd.f32 %v563, %v693
      %v695 = vpop.f32.mrf.mxu0
      %696 = vmatprep.mubr.f32.mxu0 0.0
      %v697 = vand.u32 %v255, 4294901760
      %v698 = vsub.f32 %v255, %v697
      %699 = vmatmul.mubr.f32.gmra.mxu0 %v698
      %v700 = vpop.f32.mrf.mxu0
      %v701 = vadd.f32 %v569, %v700
      %v702 = vpop.f32.mrf.mxu0
      %703 = vmatprep.mubr.f32.mxu0 0.0
      %v704 = vand.u32 %v258, 4294901760
      %v705 = vsub.f32 %v258, %v704
      %706 = vmatmul.mubr.f32.gmra.mxu0 %v705
      %v707 = vpop.f32.mrf.mxu0
      %v708 = vadd.f32 %v575, %v707
      %v709 = vpop.f32.mrf.mxu0
      %710 = vmatprep.mubr.f32.mxu0 0.0
      %v711 = vand.u32 %v261, 4294901760
      %v712 = vsub.f32 %v261, %v711
      %713 = vmatmul.mubr.f32.gmra.mxu0 %v712
      %v714 = vpop.f32.mrf.mxu0
      %v715 = vadd.f32 %v581, %v714
      %v716 = vpop.f32.mrf.mxu0
      %717 = vmatprep.mubr.f32.mxu0 0.0
      %v718 = vand.u32 %v264, 4294901760
      %v719 = vsub.f32 %v264, %v718
      %720 = vmatmul.mubr.f32.gmra.mxu0 %v719
      %v721 = vpop.f32.mrf.mxu0
      %v722 = vadd.f32 %v587, %v721
      %v723 = vpop.f32.mrf.mxu0
      %724 = vmatprep.mubr.f32.mxu0 0.0
      %v725 = vand.u32 %v267, 4294901760
      %v726 = vsub.f32 %v267, %v725
      %727 = vmatmul.mubr.f32.gmra.mxu0 %v726
      %v728 = vpop.f32.mrf.mxu0
      %v729 = vadd.f32 %v593, %v728
      %v730 = vpop.f32.mrf.mxu0
      %731 = vmatprep.mubr.f32.mxu0 0.0
      %v732 = vand.u32 %v270, 4294901760
      %v733 = vsub.f32 %v270, %v732
      %734 = vmatmul.mubr.f32.gmra.mxu0 %v733
      %v735 = vpop.f32.mrf.mxu0
      %v736 = vadd.f32 %v599, %v735
      %v737 = vpop.f32.mrf.mxu0
      %738 = vdwg.mxu0
      %739 = vmatprep.subr.mxu0 0.0
      %740 = vmatpush1.xpose.msra.mxu0 0.0
      %741 = vmatprep.subr.mxu0 0.0
      %742 = vmatpush1.xpose.msra.mxu0 0.0
      %743 = vmatprep.subr.mxu0 0.0
      %744 = vmatpush1.xpose.msra.mxu0 0.0
      %745 = vmatprep.subr.mxu0 0.0
      %746 = vmatpush1.xpose.msra.mxu0 0.0
      %747 = vmatprep.subr.mxu0 0.0
      %748 = vmatpush1.xpose.msra.mxu0 0.0
      %749 = vmatprep.subr.mxu0 0.0
      %750 = vmatpush1.xpose.msra.mxu0 0.0
      %751 = vmatprep.subr.mxu0 0.0
      %752 = vmatpush1.xpose.msra.mxu0 0.0
      %753 = vmatprep.subr.mxu0 0.0
      %754 = vmatpush1.xpose.msra.mxu0 0.0
      %755 = vmatprep.subr.mxu0 0.0
      %v756 = vand.u32 %v294, 4294901760
      %757 = vmatpush1.xpose.msra.mxu0 %v756
      %758 = vmatprep.subr.mxu0 0.0
      %v759 = vand.u32 %v291, 4294901760
      %760 = vmatpush1.xpose.msra.mxu0 %v759
      %761 = vmatprep.subr.mxu0 0.0
      %v762 = vand.u32 %v288, 4294901760
      %763 = vmatpush1.xpose.msra.mxu0 %v762
      %764 = vmatprep.subr.mxu0 0.0
      %v765 = vand.u32 %v285, 4294901760
      %766 = vmatpush1.xpose.msra.mxu0 %v765
      %767 = vmatprep.subr.mxu0 0.0
      %v768 = vand.u32 %v282, 4294901760
      %769 = vmatpush1.xpose.msra.mxu0 %v768
      %770 = vmatprep.subr.mxu0 0.0
      %v771 = vand.u32 %v279, 4294901760
      %772 = vmatpush1.xpose.msra.mxu0 %v771
      %773 = vmatprep.subr.mxu0 0.0
      %v774 = vand.u32 %v276, 4294901760
      %775 = vmatpush1.xpose.msra.mxu0 %v774
      %776 = vmatprep.subr.mxu0 0.0
      %v777 = vand.u32 %v273, 4294901760
      %778 = vmatpush1.xpose.msra.mxu0 %v777
      %779 = vmatprep.subr.mxu0 0.0
      %780 = vmatpush2.xpose.msra.mxu0 0.0
      %781 = vmatprep.subr.mxu0 0.0
      %782 = vmatpush2.xpose.msra.mxu0 0.0
      %783 = vmatprep.subr.mxu0 0.0
      %784 = vmatpush2.xpose.msra.mxu0 0.0
      %785 = vmatprep.subr.mxu0 0.0
      %786 = vmatpush2.xpose.msra.mxu0 0.0
      %787 = vmatprep.subr.mxu0 0.0
      %788 = vmatpush2.xpose.msra.mxu0 0.0
      %789 = vmatprep.subr.mxu0 0.0
      %790 = vmatpush2.xpose.msra.mxu0 0.0
      %791 = vmatprep.subr.mxu0 0.0
      %792 = vmatpush2.xpose.msra.mxu0 0.0
      %793 = vmatprep.subr.mxu0 0.0
      %794 = vmatpush2.xpose.msra.mxu0 0.0
      %795 = vmatprep.subr.mxu0 0.0
      %796 = vmatpush2.xpose.msra.mxu0 0.0
      %797 = vmatprep.subr.mxu0 0.0
      %798 = vmatpush2.xpose.msra.mxu0 0.0
      %799 = vmatprep.subr.mxu0 0.0
      %800 = vmatpush2.xpose.msra.mxu0 0.0
      %801 = vmatprep.subr.mxu0 0.0
      %802 = vmatpush2.xpose.msra.mxu0 0.0
      %803 = vmatprep.subr.mxu0 0.0
      %804 = vmatpush2.xpose.msra.mxu0 0.0
      %805 = vmatprep.subr.mxu0 0.0
      %806 = vmatpush2.xpose.msra.mxu0 0.0
      %807 = vmatprep.subr.mxu0 0.0
      %808 = vmatpush2.xpose.msra.mxu0 0.0
      %809 = vmatprep.subr.mxu0 0.0
      %810 = vmatpush2.xpose.msra.mxu0 0.0
      %811 = vmatprep.mubr.f32.mxu0 0.0
      %v812 = vand.u32 %v249, 4294901760
      %v813 = vsub.f32 %v249, %v812
      %v814 = vand.u32 %v813, 4294901760
      %815 = vmatmul.mubr.f32.gmra.mxu0 %v814
      %v816 = vpop.f32.mrf.mxu0
      %v817 = vadd.f32 %v687, %v816
      %v818 = vpop.f32.mrf.mxu0
      %819 = vmatprep.mubr.f32.mxu0 0.0
      %v820 = vand.u32 %v252, 4294901760
      %v821 = vsub.f32 %v252, %v820
      %v822 = vand.u32 %v821, 4294901760
      %823 = vmatmul.mubr.f32.gmra.mxu0 %v822
      %v824 = vpop.f32.mrf.mxu0
      %v825 = vadd.f32 %v694, %v824
      %v826 = vpop.f32.mrf.mxu0
      %827 = vmatprep.mubr.f32.mxu0 0.0
      %v828 = vand.u32 %v255, 4294901760
      %v829 = vsub.f32 %v255, %v828
      %v830 = vand.u32 %v829, 4294901760
      %831 = vmatmul.mubr.f32.gmra.mxu0 %v830
      %v832 = vpop.f32.mrf.mxu0
      %v833 = vadd.f32 %v701, %v832
      %v834 = vpop.f32.mrf.mxu0
      %835 = vmatprep.mubr.f32.mxu0 0.0
      %v836 = vand.u32 %v258, 4294901760
      %v837 = vsub.f32 %v258, %v836
      %v838 = vand.u32 %v837, 4294901760
      %839 = vmatmul.mubr.f32.gmra.mxu0 %v838
      %v840 = vpop.f32.mrf.mxu0
      %v841 = vadd.f32 %v708, %v840
      %v842 = vpop.f32.mrf.mxu0
      %843 = vmatprep.mubr.f32.mxu0 0.0
      %v844 = vand.u32 %v261, 4294901760
      %v845 = vsub.f32 %v261, %v844
      %v846 = vand.u32 %v845, 4294901760
      %847 = vmatmul.mubr.f32.gmra.mxu0 %v846
      %v848 = vpop.f32.mrf.mxu0
      %v849 = vadd.f32 %v715, %v848
      %v850 = vpop.f32.mrf.mxu0
      %851 = vmatprep.mubr.f32.mxu0 0.0
      %v852 = vand.u32 %v264, 4294901760
      %v853 = vsub.f32 %v264, %v852
      %v854 = vand.u32 %v853, 4294901760
      %855 = vmatmul.mubr.f32.gmra.mxu0 %v854
      %v856 = vpop.f32.mrf.mxu0
      %v857 = vadd.f32 %v722, %v856
      %v858 = vpop.f32.mrf.mxu0
      %859 = vmatprep.mubr.f32.mxu0 0.0
      %v860 = vand.u32 %v267, 4294901760
      %v861 = vsub.f32 %v267, %v860
      %v862 = vand.u32 %v861, 4294901760
      %863 = vmatmul.mubr.f32.gmra.mxu0 %v862
      %v864 = vpop.f32.mrf.mxu0
      %v865 = vadd.f32 %v729, %v864
      %v866 = vpop.f32.mrf.mxu0
      %867 = vmatprep.mubr.f32.mxu0 0.0
      %v868 = vand.u32 %v270, 4294901760
      %v869 = vsub.f32 %v270, %v868
      %v870 = vand.u32 %v869, 4294901760
      %871 = vmatmul.mubr.f32.gmra.mxu0 %v870
      %v872 = vpop.f32.mrf.mxu0
      %v873 = vadd.f32 %v736, %v872
      %v874 = vpop.f32.mrf.mxu0
      %875 = vdwg.mxu0
      %876 = vmatprep.subr.mxu0 0.0
      %877 = vmatpush1.xpose.msra.mxu0 0.0
      %878 = vmatprep.subr.mxu0 0.0
      %879 = vmatpush1.xpose.msra.mxu0 0.0
      %880 = vmatprep.subr.mxu0 0.0
      %881 = vmatpush1.xpose.msra.mxu0 0.0
      %882 = vmatprep.subr.mxu0 0.0
      %883 = vmatpush1.xpose.msra.mxu0 0.0
      %884 = vmatprep.subr.mxu0 0.0
      %885 = vmatpush1.xpose.msra.mxu0 0.0
      %886 = vmatprep.subr.mxu0 0.0
      %887 = vmatpush1.xpose.msra.mxu0 0.0
      %888 = vmatprep.subr.mxu0 0.0
      %889 = vmatpush1.xpose.msra.mxu0 0.0
      %890 = vmatprep.subr.mxu0 0.0
      %891 = vmatpush1.xpose.msra.mxu0 0.0
      %892 = vmatprep.subr.mxu0 0.0
      %v893 = vand.u32 %v294, 4294901760
      %v894 = vsub.f32 %v294, %v893
      %v895 = vand.u32 %v894, 4294901760
      %896 = vmatpush1.xpose.msra.mxu0 %v895
      %897 = vmatprep.subr.mxu0 0.0
      %v898 = vand.u32 %v291, 4294901760
      %v899 = vsub.f32 %v291, %v898
      %v900 = vand.u32 %v899, 4294901760
      %901 = vmatpush1.xpose.msra.mxu0 %v900
      %902 = vmatprep.subr.mxu0 0.0
      %v903 = vand.u32 %v288, 4294901760
      %v904 = vsub.f32 %v288, %v903
      %v905 = vand.u32 %v904, 4294901760
      %906 = vmatpush1.xpose.msra.mxu0 %v905
      %907 = vmatprep.subr.mxu0 0.0
      %v908 = vand.u32 %v285, 4294901760
      %v909 = vsub.f32 %v285, %v908
      %v910 = vand.u32 %v909, 4294901760
      %911 = vmatpush1.xpose.msra.mxu0 %v910
      %912 = vmatprep.subr.mxu0 0.0
      %v913 = vand.u32 %v282, 4294901760
      %v914 = vsub.f32 %v282, %v913
      %v915 = vand.u32 %v914, 4294901760
      %916 = vmatpush1.xpose.msra.mxu0 %v915
      %917 = vmatprep.subr.mxu0 0.0
      %v918 = vand.u32 %v279, 4294901760
      %v919 = vsub.f32 %v279, %v918
      %v920 = vand.u32 %v919, 4294901760
      %921 = vmatpush1.xpose.msra.mxu0 %v920
      %922 = vmatprep.subr.mxu0 0.0
      %v923 = vand.u32 %v276, 4294901760
      %v924 = vsub.f32 %v276, %v923
      %v925 = vand.u32 %v924, 4294901760
      %926 = vmatpush1.xpose.msra.mxu0 %v925
      %927 = vmatprep.subr.mxu0 0.0
      %v928 = vand.u32 %v273, 4294901760
      %v929 = vsub.f32 %v273, %v928
      %v930 = vand.u32 %v929, 4294901760
      %931 = vmatpush1.xpose.msra.mxu0 %v930
      %932 = vmatprep.subr.mxu0 0.0
      %933 = vmatpush2.xpose.msra.mxu0 0.0
      %934 = vmatprep.subr.mxu0 0.0
      %935 = vmatpush2.xpose.msra.mxu0 0.0
      %936 = vmatprep.subr.mxu0 0.0
      %937 = vmatpush2.xpose.msra.mxu0 0.0
      %938 = vmatprep.subr.mxu0 0.0
      %939 = vmatpush2.xpose.msra.mxu0 0.0
      %940 = vmatprep.subr.mxu0 0.0
      %941 = vmatpush2.xpose.msra.mxu0 0.0
      %942 = vmatprep.subr.mxu0 0.0
      %943 = vmatpush2.xpose.msra.mxu0 0.0
      %944 = vmatprep.subr.mxu0 0.0
      %945 = vmatpush2.xpose.msra.mxu0 0.0
      %946 = vmatprep.subr.mxu0 0.0
      %947 = vmatpush2.xpose.msra.mxu0 0.0
      %948 = vmatprep.subr.mxu0 0.0
      %949 = vmatpush2.xpose.msra.mxu0 0.0
      %950 = vmatprep.subr.mxu0 0.0
      %951 = vmatpush2.xpose.msra.mxu0 0.0
      %952 = vmatprep.subr.mxu0 0.0
      %953 = vmatpush2.xpose.msra.mxu0 0.0
      %954 = vmatprep.subr.mxu0 0.0
      %955 = vmatpush2.xpose.msra.mxu0 0.0
      %956 = vmatprep.subr.mxu0 0.0
      %957 = vmatpush2.xpose.msra.mxu0 0.0
      %958 = vmatprep.subr.mxu0 0.0
      %959 = vmatpush2.xpose.msra.mxu0 0.0
      %960 = vmatprep.subr.mxu0 0.0
      %961 = vmatpush2.xpose.msra.mxu0 0.0
      %962 = vmatprep.subr.mxu0 0.0
      %963 = vmatpush2.xpose.msra.mxu0 0.0
      %964 = vmatprep.mubr.f32.mxu0 0.0
      %v965 = vand.u32 %v249, 4294901760
      %966 = vmatmul.mubr.f32.gmra.mxu0 %v965
      %v967 = vpop.f32.mrf.mxu0
      %v968 = vadd.f32 %v817, %v967
      %v969 = vpop.f32.mrf.mxu0
      %970 = vmatprep.mubr.f32.mxu0 0.0
      %v971 = vand.u32 %v252, 4294901760
      %972 = vmatmul.mubr.f32.gmra.mxu0 %v971
      %v973 = vpop.f32.mrf.mxu0
      %v974 = vadd.f32 %v825, %v973
      %v975 = vpop.f32.mrf.mxu0
      %976 = vmatprep.mubr.f32.mxu0 0.0
      %v977 = vand.u32 %v255, 4294901760
      %978 = vmatmul.mubr.f32.gmra.mxu0 %v977
      %v979 = vpop.f32.mrf.mxu0
      %v980 = vadd.f32 %v833, %v979
      %v981 = vpop.f32.mrf.mxu0
      %982 = vmatprep.mubr.f32.mxu0 0.0
      %v983 = vand.u32 %v258, 4294901760
      %984 = vmatmul.mubr.f32.gmra.mxu0 %v983
      %v985 = vpop.f32.mrf.mxu0
      %v986 = vadd.f32 %v841, %v985
      %v987 = vpop.f32.mrf.mxu0
      %988 = vmatprep.mubr.f32.mxu0 0.0
      %v989 = vand.u32 %v261, 4294901760
      %990 = vmatmul.mubr.f32.gmra.mxu0 %v989
      %v991 = vpop.f32.mrf.mxu0
      %v992 = vadd.f32 %v849, %v991
      %v993 = vpop.f32.mrf.mxu0
      %994 = vmatprep.mubr.f32.mxu0 0.0
      %v995 = vand.u32 %v264, 4294901760
      %996 = vmatmul.mubr.f32.gmra.mxu0 %v995
      %v997 = vpop.f32.mrf.mxu0
      %v998 = vadd.f32 %v857, %v997
      %v999 = vpop.f32.mrf.mxu0
      %1000 = vmatprep.mubr.f32.mxu0 0.0
      %v1001 = vand.u32 %v267, 4294901760
      %1002 = vmatmul.mubr.f32.gmra.mxu0 %v1001
      %v1003 = vpop.f32.mrf.mxu0
      %v1004 = vadd.f32 %v865, %v1003
      %v1005 = vpop.f32.mrf.mxu0
      %1006 = vmatprep.mubr.f32.mxu0 0.0
      %v1007 = vand.u32 %v270, 4294901760
      %1008 = vmatmul.mubr.f32.gmra.mxu0 %v1007
      %v1009 = vpop.f32.mrf.mxu0
      %v1010 = vadd.f32 %v873, %v1009
      %v1011 = vpop.f32.mrf.mxu0
      %1012 = vdwg.mxu0
      %1013 = vmatprep.subr.mxu0 0.0
      %1014 = vmatpush1.xpose.msra.mxu0 0.0
      %1015 = vmatprep.subr.mxu0 0.0
      %1016 = vmatpush1.xpose.msra.mxu0 0.0
      %1017 = vmatprep.subr.mxu0 0.0
      %1018 = vmatpush1.xpose.msra.mxu0 0.0
      %1019 = vmatprep.subr.mxu0 0.0
      %1020 = vmatpush1.xpose.msra.mxu0 0.0
      %1021 = vmatprep.subr.mxu0 0.0
      %1022 = vmatpush1.xpose.msra.mxu0 0.0
      %1023 = vmatprep.subr.mxu0 0.0
      %1024 = vmatpush1.xpose.msra.mxu0 0.0
      %1025 = vmatprep.subr.mxu0 0.0
      %1026 = vmatpush1.xpose.msra.mxu0 0.0
      %1027 = vmatprep.subr.mxu0 0.0
      %1028 = vmatpush1.xpose.msra.mxu0 0.0
      %1029 = vmatprep.subr.mxu0 0.0
      %v1030 = vand.u32 %v294, 4294901760
      %1031 = vmatpush1.xpose.msra.mxu0 %v1030
      %1032 = vmatprep.subr.mxu0 0.0
      %v1033 = vand.u32 %v291, 4294901760
      %1034 = vmatpush1.xpose.msra.mxu0 %v1033
      %1035 = vmatprep.subr.mxu0 0.0
      %v1036 = vand.u32 %v288, 4294901760
      %1037 = vmatpush1.xpose.msra.mxu0 %v1036
      %1038 = vmatprep.subr.mxu0 0.0
      %v1039 = vand.u32 %v285, 4294901760
      %1040 = vmatpush1.xpose.msra.mxu0 %v1039
      %1041 = vmatprep.subr.mxu0 0.0
      %v1042 = vand.u32 %v282, 4294901760
      %1043 = vmatpush1.xpose.msra.mxu0 %v1042
      %1044 = vmatprep.subr.mxu0 0.0
      %v1045 = vand.u32 %v279, 4294901760
      %1046 = vmatpush1.xpose.msra.mxu0 %v1045
      %1047 = vmatprep.subr.mxu0 0.0
      %v1048 = vand.u32 %v276, 4294901760
      %1049 = vmatpush1.xpose.msra.mxu0 %v1048
      %1050 = vmatprep.subr.mxu0 0.0
      %v1051 = vand.u32 %v273, 4294901760
      %1052 = vmatpush1.xpose.msra.mxu0 %v1051
      %1053 = vmatprep.subr.mxu0 0.0
      %1054 = vmatpush2.xpose.msra.mxu0 0.0
      %1055 = vmatprep.subr.mxu0 0.0
      %1056 = vmatpush2.xpose.msra.mxu0 0.0
      %1057 = vmatprep.subr.mxu0 0.0
      %1058 = vmatpush2.xpose.msra.mxu0 0.0
      %1059 = vmatprep.subr.mxu0 0.0
      %1060 = vmatpush2.xpose.msra.mxu0 0.0
      %1061 = vmatprep.subr.mxu0 0.0
      %1062 = vmatpush2.xpose.msra.mxu0 0.0
      %1063 = vmatprep.subr.mxu0 0.0
      %1064 = vmatpush2.xpose.msra.mxu0 0.0
      %1065 = vmatprep.subr.mxu0 0.0
      %1066 = vmatpush2.xpose.msra.mxu0 0.0
      %1067 = vmatprep.subr.mxu0 0.0
      %1068 = vmatpush2.xpose.msra.mxu0 0.0
      %1069 = vmatprep.subr.mxu0 0.0
      %1070 = vmatpush2.xpose.msra.mxu0 0.0
      %1071 = vmatprep.subr.mxu0 0.0
      %1072 = vmatpush2.xpose.msra.mxu0 0.0
      %1073 = vmatprep.subr.mxu0 0.0
      %1074 = vmatpush2.xpose.msra.mxu0 0.0
      %1075 = vmatprep.subr.mxu0 0.0
      %1076 = vmatpush2.xpose.msra.mxu0 0.0
      %1077 = vmatprep.subr.mxu0 0.0
      %1078 = vmatpush2.xpose.msra.mxu0 0.0
      %1079 = vmatprep.subr.mxu0 0.0
      %1080 = vmatpush2.xpose.msra.mxu0 0.0
      %1081 = vmatprep.subr.mxu0 0.0
      %1082 = vmatpush2.xpose.msra.mxu0 0.0
      %1083 = vmatprep.subr.mxu0 0.0
      %1084 = vmatpush2.xpose.msra.mxu0 0.0
      %1085 = vmatprep.mubr.f32.mxu0 0.0
      %v1086 = vand.u32 %v249, 4294901760
      %1087 = vmatmul.mubr.f32.gmra.mxu0 %v1086
      %v1088 = vpop.f32.mrf.mxu0
      %v1089 = vadd.f32 %v968, %v1088
      %v1090 = vpop.f32.mrf.mxu0
      %1091 = vmatprep.mubr.f32.mxu0 0.0
      %v1092 = vand.u32 %v252, 4294901760
      %1093 = vmatmul.mubr.f32.gmra.mxu0 %v1092
      %v1094 = vpop.f32.mrf.mxu0
      %v1095 = vadd.f32 %v974, %v1094
      %v1096 = vpop.f32.mrf.mxu0
      %1097 = vmatprep.mubr.f32.mxu0 0.0
      %v1098 = vand.u32 %v255, 4294901760
      %1099 = vmatmul.mubr.f32.gmra.mxu0 %v1098
      %v1100 = vpop.f32.mrf.mxu0
      %v1101 = vadd.f32 %v980, %v1100
      %v1102 = vpop.f32.mrf.mxu0
      %1103 = vmatprep.mubr.f32.mxu0 0.0
      %v1104 = vand.u32 %v258, 4294901760
      %1105 = vmatmul.mubr.f32.gmra.mxu0 %v1104
      %v1106 = vpop.f32.mrf.mxu0
      %v1107 = vadd.f32 %v986, %v1106
      %v1108 = vpop.f32.mrf.mxu0
      %1109 = vmatprep.mubr.f32.mxu0 0.0
      %v1110 = vand.u32 %v261, 4294901760
      %1111 = vmatmul.mubr.f32.gmra.mxu0 %v1110
      %v1112 = vpop.f32.mrf.mxu0
      %v1113 = vadd.f32 %v992, %v1112
      %v1114 = vpop.f32.mrf.mxu0
      %1115 = vmatprep.mubr.f32.mxu0 0.0
      %v1116 = vand.u32 %v264, 4294901760
      %1117 = vmatmul.mubr.f32.gmra.mxu0 %v1116
      %v1118 = vpop.f32.mrf.mxu0
      %v1119 = vadd.f32 %v998, %v1118
      %v1120 = vpop.f32.mrf.mxu0
      %1121 = vmatprep.mubr.f32.mxu0 0.0
      %v1122 = vand.u32 %v267, 4294901760
      %1123 = vmatmul.mubr.f32.gmra.mxu0 %v1122
      %v1124 = vpop.f32.mrf.mxu0
      %v1125 = vadd.f32 %v1004, %v1124
      %v1126 = vpop.f32.mrf.mxu0
      %1127 = vmatprep.mubr.f32.mxu0 0.0
      %v1128 = vand.u32 %v270, 4294901760
      %1129 = vmatmul.mubr.f32.gmra.mxu0 %v1128
      %v1130 = vpop.f32.mrf.mxu0
      %v1131 = vadd.f32 %v1010, %v1130
      %v1132 = vpop.f32.mrf.mxu0
      %1133 = vdwg.mxu0
      %vm1134 = vcmask 523264
      %v1135 = vsel %vm1134, %v1089, -inf
      %1136 = vmax.xlane.f32.xlu0 %v1135
      %v1137 = vpop.xlane.xlu0 %1136
      %v1138 = vsel %vm1134, %v1095, -inf
      %1139 = vmax.xlane.f32.xlu0 %v1138
      %v1140 = vpop.xlane.xlu0 %1139
      %v1141 = vsel %vm1134, %v1101, -inf
      %1142 = vmax.xlane.f32.xlu0 %v1141
      %v1143 = vpop.xlane.xlu0 %1142
      %v1144 = vsel %vm1134, %v1107, -inf
      %1145 = vmax.xlane.f32.xlu0 %v1144
      %v1146 = vpop.xlane.xlu0 %1145
      %v1147 = vsel %vm1134, %v1113, -inf
      %1148 = vmax.xlane.f32.xlu0 %v1147
      %v1149 = vpop.xlane.xlu0 %1148
      %v1150 = vsel %vm1134, %v1119, -inf
      %1151 = vmax.xlane.f32.xlu0 %v1150
      %v1152 = vpop.xlane.xlu0 %1151
      %v1153 = vsel %vm1134, %v1125, -inf
      %1154 = vmax.xlane.f32.xlu0 %v1153
      %v1155 = vpop.xlane.xlu0 %1154
      %v1156 = vsel %vm1134, %v1131, -inf
      %1157 = vmax.xlane.f32.xlu0 %v1156
      %v1158 = vpop.xlane.xlu0 %1157
      %v1159 = vsub.f32 %v1137, %v1089
      %v1160 = vsub.f32 %v1140, %v1095
      %v1161 = vsub.f32 %v1143, %v1101
      %v1162 = vsub.f32 %v1146, %v1107
      %v1163 = vsub.f32 %v1149, %v1113
      %v1164 = vsub.f32 %v1152, %v1119
      %v1165 = vsub.f32 %v1155, %v1125
      %v1166 = vsub.f32 %v1158, %v1131
      %v1167 = vsub.f32 0.0, %v1159
      %v1168 = vsub.f32 0.0, %v1160
      %v1169 = vsub.f32 0.0, %v1161
      %v1170 = vsub.f32 0.0, %v1162
      %v1171 = vsub.f32 0.0, %v1163
      %v1172 = vsub.f32 0.0, %v1164
      %v1173 = vsub.f32 0.0, %v1165
      %v1174 = vsub.f32 0.0, %v1166
      %v1175 = vmul.f32 %v1167, 1.442695
      %v1176 = vpow.pop %v1175
      %v1177 = vmul.f32 %v1168, 1.442695
      %v1178 = vpow.pop %v1177
      %v1179 = vmul.f32 %v1169, 1.442695
      %v1180 = vpow.pop %v1179
      %v1181 = vmul.f32 %v1170, 1.442695
      %v1182 = vpow.pop %v1181
      %v1183 = vmul.f32 %v1171, 1.442695
      %v1184 = vpow.pop %v1183
      %v1185 = vmul.f32 %v1172, 1.442695
      %v1186 = vpow.pop %v1185
      %v1187 = vmul.f32 %v1173, 1.442695
      %v1188 = vpow.pop %v1187
      %v1189 = vmul.f32 %v1174, 1.442695
      %v1190 = vpow.pop %v1189
      %v1191 = vadd.f32 %v1176, 1.0
      %v1192 = vadd.f32 %v1178, 1.0
      %v1193 = vadd.f32 %v1180, 1.0
      %v1194 = vadd.f32 %v1182, 1.0
      %v1195 = vadd.f32 %v1184, 1.0
      %v1196 = vadd.f32 %v1186, 1.0
      %v1197 = vadd.f32 %v1188, 1.0
      %v1198 = vadd.f32 %v1190, 1.0
      %v1199 = vrcp.pop %v1191
      %v1200 = vmul.f32 1.0, %v1199
      %v1201 = vrcp.pop %v1192
      %v1202 = vmul.f32 1.0, %v1201
      %v1203 = vrcp.pop %v1193
      %v1204 = vmul.f32 1.0, %v1203
      %v1205 = vrcp.pop %v1194
      %v1206 = vmul.f32 1.0, %v1205
      %v1207 = vrcp.pop %v1195
      %v1208 = vmul.f32 1.0, %v1207
      %v1209 = vrcp.pop %v1196
      %v1210 = vmul.f32 1.0, %v1209
      %v1211 = vrcp.pop %v1197
      %v1212 = vmul.f32 1.0, %v1211
      %v1213 = vrcp.pop %v1198
      %v1214 = vmul.f32 1.0, %v1213
      %v1216 = vsel %vm1134, %v1200, 0
      %v1219 = vsel %vm1134, %v1202, 0
      %v1222 = vsel %vm1134, %v1204, 0
      %v1225 = vsel %vm1134, %v1206, 0
      %v1228 = vsel %vm1134, %v1208, 0
      %v1231 = vsel %vm1134, %v1210, 0
      %v1234 = vsel %vm1134, %v1212, 0
      %v1237 = vsel %vm1134, %v1214, 0
      %1239 = vmatprep.subr.mxu0 0.0
      %1240 = vmatpush1.msra.mxu0 0.0
      %1241 = vmatprep.subr.mxu0 0.0
      %1242 = vmatpush1.msra.mxu0 0.0
      %1243 = vmatprep.subr.mxu0 0.0
      %1244 = vmatpush1.msra.mxu0 0.0
      %1245 = vmatprep.subr.mxu0 0.0
      %1246 = vmatpush1.msra.mxu0 0.0
      %1247 = vmatprep.subr.mxu0 0.0
      %1248 = vmatpush1.msra.mxu0 0.0
      %1249 = vmatprep.subr.mxu0 0.0
      %1250 = vmatpush1.msra.mxu0 0.0
      %1251 = vmatprep.subr.mxu0 0.0
      %1252 = vmatpush1.msra.mxu0 0.0
      %1253 = vmatprep.subr.mxu0 0.0
      %1254 = vmatpush1.msra.mxu0 0.0
      %1255 = vmatprep.subr.mxu0 0.0
      %v1256 = vand.u32 %v246, 4294901760
      %1257 = vmatpush1.msra.mxu0 %v1256
      %1258 = vmatprep.subr.mxu0 0.0
      %v1259 = vand.u32 %v245, 4294901760
      %1260 = vmatpush1.msra.mxu0 %v1259
      %1261 = vmatprep.subr.mxu0 0.0
      %v1262 = vand.u32 %v244, 4294901760
      %1263 = vmatpush1.msra.mxu0 %v1262
      %1264 = vmatprep.subr.mxu0 0.0
      %v1265 = vand.u32 %v243, 4294901760
      %1266 = vmatpush1.msra.mxu0 %v1265
      %1267 = vmatprep.subr.mxu0 0.0
      %v1268 = vand.u32 %v242, 4294901760
      %1269 = vmatpush1.msra.mxu0 %v1268
      %1270 = vmatprep.subr.mxu0 0.0
      %v1271 = vand.u32 %v241, 4294901760
      %1272 = vmatpush1.msra.mxu0 %v1271
      %1273 = vmatprep.subr.mxu0 0.0
      %v1274 = vand.u32 %v240, 4294901760
      %1275 = vmatpush1.msra.mxu0 %v1274
      %1276 = vmatprep.subr.mxu0 0.0
      %v1277 = vand.u32 %v239, 4294901760
      %1278 = vmatpush1.msra.mxu0 %v1277
      %1279 = vmatprep.subr.mxu0 0.0
      %1280 = vmatpush2.msra.mxu0 0.0
      %1281 = vmatprep.subr.mxu0 0.0
      %1282 = vmatpush2.msra.mxu0 0.0
      %1283 = vmatprep.subr.mxu0 0.0
      %1284 = vmatpush2.msra.mxu0 0.0
      %1285 = vmatprep.subr.mxu0 0.0
      %1286 = vmatpush2.msra.mxu0 0.0
      %1287 = vmatprep.subr.mxu0 0.0
      %1288 = vmatpush2.msra.mxu0 0.0
      %1289 = vmatprep.subr.mxu0 0.0
      %1290 = vmatpush2.msra.mxu0 0.0
      %1291 = vmatprep.subr.mxu0 0.0
      %1292 = vmatpush2.msra.mxu0 0.0
      %1293 = vmatprep.subr.mxu0 0.0
      %1294 = vmatpush2.msra.mxu0 0.0
      %1295 = vmatprep.subr.mxu0 0.0
      %1296 = vmatpush2.msra.mxu0 0.0
      %1297 = vmatprep.subr.mxu0 0.0
      %1298 = vmatpush2.msra.mxu0 0.0
      %1299 = vmatprep.subr.mxu0 0.0
      %1300 = vmatpush2.msra.mxu0 0.0
      %1301 = vmatprep.subr.mxu0 0.0
      %1302 = vmatpush2.msra.mxu0 0.0
      %1303 = vmatprep.subr.mxu0 0.0
      %1304 = vmatpush2.msra.mxu0 0.0
      %1305 = vmatprep.subr.mxu0 0.0
      %1306 = vmatpush2.msra.mxu0 0.0
      %1307 = vmatprep.subr.mxu0 0.0
      %1308 = vmatpush2.msra.mxu0 0.0
      %1309 = vmatprep.subr.mxu0 0.0
      %1310 = vmatpush2.msra.mxu0 0.0
      %1311 = vmatprep.mubr.f32.mxu0 0.0
      %v1312 = vand.u32 %v1216, 4294901760
      %v1313 = vsub.f32 %v1216, %v1312
      %v1314 = vand.u32 %v1313, 4294901760
      %v1315 = vsub.f32 %v1313, %v1314
      %v1316 = vand.u32 %v1315, 4294901760
      %1317 = vmatmul.mubr.f32.gmra.mxu0 %v1316
      %v1318 = vpop.f32.mrf.mxu0
      %v1319 = vadd.f32 0.0, %v1318
      %v1320 = vpop.f32.mrf.mxu0
      %1321 = vmatprep.mubr.f32.mxu0 0.0
      %v1322 = vand.u32 %v1219, 4294901760
      %v1323 = vsub.f32 %v1219, %v1322
      %v1324 = vand.u32 %v1323, 4294901760
      %v1325 = vsub.f32 %v1323, %v1324
      %v1326 = vand.u32 %v1325, 4294901760
      %1327 = vmatmul.mubr.f32.gmra.mxu0 %v1326
      %v1328 = vpop.f32.mrf.mxu0
      %v1329 = vadd.f32 0.0, %v1328
      %v1330 = vpop.f32.mrf.mxu0
      %1331 = vmatprep.mubr.f32.mxu0 0.0
      %v1332 = vand.u32 %v1222, 4294901760
      %v1333 = vsub.f32 %v1222, %v1332
      %v1334 = vand.u32 %v1333, 4294901760
      %v1335 = vsub.f32 %v1333, %v1334
      %v1336 = vand.u32 %v1335, 4294901760
      %1337 = vmatmul.mubr.f32.gmra.mxu0 %v1336
      %v1338 = vpop.f32.mrf.mxu0
      %v1339 = vadd.f32 0.0, %v1338
      %v1340 = vpop.f32.mrf.mxu0
      %1341 = vmatprep.mubr.f32.mxu0 0.0
      %v1342 = vand.u32 %v1225, 4294901760
      %v1343 = vsub.f32 %v1225, %v1342
      %v1344 = vand.u32 %v1343, 4294901760
      %v1345 = vsub.f32 %v1343, %v1344
      %v1346 = vand.u32 %v1345, 4294901760
      %1347 = vmatmul.mubr.f32.gmra.mxu0 %v1346
      %v1348 = vpop.f32.mrf.mxu0
      %v1349 = vadd.f32 0.0, %v1348
      %v1350 = vpop.f32.mrf.mxu0
      %1351 = vmatprep.mubr.f32.mxu0 0.0
      %v1352 = vand.u32 %v1228, 4294901760
      %v1353 = vsub.f32 %v1228, %v1352
      %v1354 = vand.u32 %v1353, 4294901760
      %v1355 = vsub.f32 %v1353, %v1354
      %v1356 = vand.u32 %v1355, 4294901760
      %1357 = vmatmul.mubr.f32.gmra.mxu0 %v1356
      %v1358 = vpop.f32.mrf.mxu0
      %v1359 = vadd.f32 0.0, %v1358
      %v1360 = vpop.f32.mrf.mxu0
      %1361 = vmatprep.mubr.f32.mxu0 0.0
      %v1362 = vand.u32 %v1231, 4294901760
      %v1363 = vsub.f32 %v1231, %v1362
      %v1364 = vand.u32 %v1363, 4294901760
      %v1365 = vsub.f32 %v1363, %v1364
      %v1366 = vand.u32 %v1365, 4294901760
      %1367 = vmatmul.mubr.f32.gmra.mxu0 %v1366
      %v1368 = vpop.f32.mrf.mxu0
      %v1369 = vadd.f32 0.0, %v1368
      %v1370 = vpop.f32.mrf.mxu0
      %1371 = vmatprep.mubr.f32.mxu0 0.0
      %v1372 = vand.u32 %v1234, 4294901760
      %v1373 = vsub.f32 %v1234, %v1372
      %v1374 = vand.u32 %v1373, 4294901760
      %v1375 = vsub.f32 %v1373, %v1374
      %v1376 = vand.u32 %v1375, 4294901760
      %1377 = vmatmul.mubr.f32.gmra.mxu0 %v1376
      %v1378 = vpop.f32.mrf.mxu0
      %v1379 = vadd.f32 0.0, %v1378
      %v1380 = vpop.f32.mrf.mxu0
      %1381 = vmatprep.mubr.f32.mxu0 0.0
      %v1382 = vand.u32 %v1237, 4294901760
      %v1383 = vsub.f32 %v1237, %v1382
      %v1384 = vand.u32 %v1383, 4294901760
      %v1385 = vsub.f32 %v1383, %v1384
      %v1386 = vand.u32 %v1385, 4294901760
      %1387 = vmatmul.mubr.f32.gmra.mxu0 %v1386
      %v1388 = vpop.f32.mrf.mxu0
      %v1389 = vadd.f32 0.0, %v1388
      %v1390 = vpop.f32.mrf.mxu0
      %1391 = vdwg.mxu0
      %1392 = vmatprep.subr.mxu0 0.0
      %1393 = vmatpush1.msra.mxu0 0.0
      %1394 = vmatprep.subr.mxu0 0.0
      %1395 = vmatpush1.msra.mxu0 0.0
      %1396 = vmatprep.subr.mxu0 0.0
      %1397 = vmatpush1.msra.mxu0 0.0
      %1398 = vmatprep.subr.mxu0 0.0
      %1399 = vmatpush1.msra.mxu0 0.0
      %1400 = vmatprep.subr.mxu0 0.0
      %1401 = vmatpush1.msra.mxu0 0.0
      %1402 = vmatprep.subr.mxu0 0.0
      %1403 = vmatpush1.msra.mxu0 0.0
      %1404 = vmatprep.subr.mxu0 0.0
      %1405 = vmatpush1.msra.mxu0 0.0
      %1406 = vmatprep.subr.mxu0 0.0
      %1407 = vmatpush1.msra.mxu0 0.0
      %1408 = vmatprep.subr.mxu0 0.0
      %v1409 = vand.u32 %v246, 4294901760
      %v1410 = vsub.f32 %v246, %v1409
      %v1411 = vand.u32 %v1410, 4294901760
      %v1412 = vsub.f32 %v1410, %v1411
      %v1413 = vand.u32 %v1412, 4294901760
      %1414 = vmatpush1.msra.mxu0 %v1413
      %1415 = vmatprep.subr.mxu0 0.0
      %v1416 = vand.u32 %v245, 4294901760
      %v1417 = vsub.f32 %v245, %v1416
      %v1418 = vand.u32 %v1417, 4294901760
      %v1419 = vsub.f32 %v1417, %v1418
      %v1420 = vand.u32 %v1419, 4294901760
      %1421 = vmatpush1.msra.mxu0 %v1420
      %1422 = vmatprep.subr.mxu0 0.0
      %v1423 = vand.u32 %v244, 4294901760
      %v1424 = vsub.f32 %v244, %v1423
      %v1425 = vand.u32 %v1424, 4294901760
      %v1426 = vsub.f32 %v1424, %v1425
      %v1427 = vand.u32 %v1426, 4294901760
      %1428 = vmatpush1.msra.mxu0 %v1427
      %1429 = vmatprep.subr.mxu0 0.0
      %v1430 = vand.u32 %v243, 4294901760
      %v1431 = vsub.f32 %v243, %v1430
      %v1432 = vand.u32 %v1431, 4294901760
      %v1433 = vsub.f32 %v1431, %v1432
      %v1434 = vand.u32 %v1433, 4294901760
      %1435 = vmatpush1.msra.mxu0 %v1434
      %1436 = vmatprep.subr.mxu0 0.0
      %v1437 = vand.u32 %v242, 4294901760
      %v1438 = vsub.f32 %v242, %v1437
      %v1439 = vand.u32 %v1438, 4294901760
      %v1440 = vsub.f32 %v1438, %v1439
      %v1441 = vand.u32 %v1440, 4294901760
      %1442 = vmatpush1.msra.mxu0 %v1441
      %1443 = vmatprep.subr.mxu0 0.0
      %v1444 = vand.u32 %v241, 4294901760
      %v1445 = vsub.f32 %v241, %v1444
      %v1446 = vand.u32 %v1445, 4294901760
      %v1447 = vsub.f32 %v1445, %v1446
      %v1448 = vand.u32 %v1447, 4294901760
      %1449 = vmatpush1.msra.mxu0 %v1448
      %1450 = vmatprep.subr.mxu0 0.0
      %v1451 = vand.u32 %v240, 4294901760
      %v1452 = vsub.f32 %v240, %v1451
      %v1453 = vand.u32 %v1452, 4294901760
      %v1454 = vsub.f32 %v1452, %v1453
      %v1455 = vand.u32 %v1454, 4294901760
      %1456 = vmatpush1.msra.mxu0 %v1455
      %1457 = vmatprep.subr.mxu0 0.0
      %v1458 = vand.u32 %v239, 4294901760
      %v1459 = vsub.f32 %v239, %v1458
      %v1460 = vand.u32 %v1459, 4294901760
      %v1461 = vsub.f32 %v1459, %v1460
      %v1462 = vand.u32 %v1461, 4294901760
      %1463 = vmatpush1.msra.mxu0 %v1462
      %1464 = vmatprep.subr.mxu0 0.0
      %1465 = vmatpush2.msra.mxu0 0.0
      %1466 = vmatprep.subr.mxu0 0.0
      %1467 = vmatpush2.msra.mxu0 0.0
      %1468 = vmatprep.subr.mxu0 0.0
      %1469 = vmatpush2.msra.mxu0 0.0
      %1470 = vmatprep.subr.mxu0 0.0
      %1471 = vmatpush2.msra.mxu0 0.0
      %1472 = vmatprep.subr.mxu0 0.0
      %1473 = vmatpush2.msra.mxu0 0.0
      %1474 = vmatprep.subr.mxu0 0.0
      %1475 = vmatpush2.msra.mxu0 0.0
      %1476 = vmatprep.subr.mxu0 0.0
      %1477 = vmatpush2.msra.mxu0 0.0
      %1478 = vmatprep.subr.mxu0 0.0
      %1479 = vmatpush2.msra.mxu0 0.0
      %1480 = vmatprep.subr.mxu0 0.0
      %1481 = vmatpush2.msra.mxu0 0.0
      %1482 = vmatprep.subr.mxu0 0.0
      %1483 = vmatpush2.msra.mxu0 0.0
      %1484 = vmatprep.subr.mxu0 0.0
      %1485 = vmatpush2.msra.mxu0 0.0
      %1486 = vmatprep.subr.mxu0 0.0
      %1487 = vmatpush2.msra.mxu0 0.0
      %1488 = vmatprep.subr.mxu0 0.0
      %1489 = vmatpush2.msra.mxu0 0.0
      %1490 = vmatprep.subr.mxu0 0.0
      %1491 = vmatpush2.msra.mxu0 0.0
      %1492 = vmatprep.subr.mxu0 0.0
      %1493 = vmatpush2.msra.mxu0 0.0
      %1494 = vmatprep.subr.mxu0 0.0
      %1495 = vmatpush2.msra.mxu0 0.0
      %1496 = vmatprep.mubr.f32.mxu0 0.0
      %v1497 = vand.u32 %v1216, 4294901760
      %1498 = vmatmul.mubr.f32.gmra.mxu0 %v1497
      %v1499 = vpop.f32.mrf.mxu0
      %v1500 = vadd.f32 %v1319, %v1499
      %v1501 = vpop.f32.mrf.mxu0
      %1502 = vmatprep.mubr.f32.mxu0 0.0
      %v1503 = vand.u32 %v1219, 4294901760
      %1504 = vmatmul.mubr.f32.gmra.mxu0 %v1503
      %v1505 = vpop.f32.mrf.mxu0
      %v1506 = vadd.f32 %v1329, %v1505
      %v1507 = vpop.f32.mrf.mxu0
      %1508 = vmatprep.mubr.f32.mxu0 0.0
      %v1509 = vand.u32 %v1222, 4294901760
      %1510 = vmatmul.mubr.f32.gmra.mxu0 %v1509
      %v1511 = vpop.f32.mrf.mxu0
      %v1512 = vadd.f32 %v1339, %v1511
      %v1513 = vpop.f32.mrf.mxu0
      %1514 = vmatprep.mubr.f32.mxu0 0.0
      %v1515 = vand.u32 %v1225, 4294901760
      %1516 = vmatmul.mubr.f32.gmra.mxu0 %v1515
      %v1517 = vpop.f32.mrf.mxu0
      %v1518 = vadd.f32 %v1349, %v1517
      %v1519 = vpop.f32.mrf.mxu0
      %1520 = vmatprep.mubr.f32.mxu0 0.0
      %v1521 = vand.u32 %v1228, 4294901760
      %1522 = vmatmul.mubr.f32.gmra.mxu0 %v1521
      %v1523 = vpop.f32.mrf.mxu0
      %v1524 = vadd.f32 %v1359, %v1523
      %v1525 = vpop.f32.mrf.mxu0
      %1526 = vmatprep.mubr.f32.mxu0 0.0
      %v1527 = vand.u32 %v1231, 4294901760
      %1528 = vmatmul.mubr.f32.gmra.mxu0 %v1527
      %v1529 = vpop.f32.mrf.mxu0
      %v1530 = vadd.f32 %v1369, %v1529
      %v1531 = vpop.f32.mrf.mxu0
      %1532 = vmatprep.mubr.f32.mxu0 0.0
      %v1533 = vand.u32 %v1234, 4294901760
      %1534 = vmatmul.mubr.f32.gmra.mxu0 %v1533
      %v1535 = vpop.f32.mrf.mxu0
      %v1536 = vadd.f32 %v1379, %v1535
      %v1537 = vpop.f32.mrf.mxu0
      %1538 = vmatprep.mubr.f32.mxu0 0.0
      %v1539 = vand.u32 %v1237, 4294901760
      %1540 = vmatmul.mubr.f32.gmra.mxu0 %v1539
      %v1541 = vpop.f32.mrf.mxu0
      %v1542 = vadd.f32 %v1389, %v1541
      %v1543 = vpop.f32.mrf.mxu0
      %1544 = vdwg.mxu0
      %1545 = vmatprep.subr.mxu0 0.0
      %1546 = vmatpush1.msra.mxu0 0.0
      %1547 = vmatprep.subr.mxu0 0.0
      %1548 = vmatpush1.msra.mxu0 0.0
      %1549 = vmatprep.subr.mxu0 0.0
      %1550 = vmatpush1.msra.mxu0 0.0
      %1551 = vmatprep.subr.mxu0 0.0
      %1552 = vmatpush1.msra.mxu0 0.0
      %1553 = vmatprep.subr.mxu0 0.0
      %1554 = vmatpush1.msra.mxu0 0.0
      %1555 = vmatprep.subr.mxu0 0.0
      %1556 = vmatpush1.msra.mxu0 0.0
      %1557 = vmatprep.subr.mxu0 0.0
      %1558 = vmatpush1.msra.mxu0 0.0
      %1559 = vmatprep.subr.mxu0 0.0
      %1560 = vmatpush1.msra.mxu0 0.0
      %1561 = vmatprep.subr.mxu0 0.0
      %v1562 = vand.u32 %v246, 4294901760
      %v1563 = vsub.f32 %v246, %v1562
      %1564 = vmatpush1.msra.mxu0 %v1563
      %1565 = vmatprep.subr.mxu0 0.0
      %v1566 = vand.u32 %v245, 4294901760
      %v1567 = vsub.f32 %v245, %v1566
      %1568 = vmatpush1.msra.mxu0 %v1567
      %1569 = vmatprep.subr.mxu0 0.0
      %v1570 = vand.u32 %v244, 4294901760
      %v1571 = vsub.f32 %v244, %v1570
      %1572 = vmatpush1.msra.mxu0 %v1571
      %1573 = vmatprep.subr.mxu0 0.0
      %v1574 = vand.u32 %v243, 4294901760
      %v1575 = vsub.f32 %v243, %v1574
      %1576 = vmatpush1.msra.mxu0 %v1575
      %1577 = vmatprep.subr.mxu0 0.0
      %v1578 = vand.u32 %v242, 4294901760
      %v1579 = vsub.f32 %v242, %v1578
      %1580 = vmatpush1.msra.mxu0 %v1579
      %1581 = vmatprep.subr.mxu0 0.0
      %v1582 = vand.u32 %v241, 4294901760
      %v1583 = vsub.f32 %v241, %v1582
      %1584 = vmatpush1.msra.mxu0 %v1583
      %1585 = vmatprep.subr.mxu0 0.0
      %v1586 = vand.u32 %v240, 4294901760
      %v1587 = vsub.f32 %v240, %v1586
      %1588 = vmatpush1.msra.mxu0 %v1587
      %1589 = vmatprep.subr.mxu0 0.0
      %v1590 = vand.u32 %v239, 4294901760
      %v1591 = vsub.f32 %v239, %v1590
      %1592 = vmatpush1.msra.mxu0 %v1591
      %1593 = vmatprep.subr.mxu0 0.0
      %1594 = vmatpush2.msra.mxu0 0.0
      %1595 = vmatprep.subr.mxu0 0.0
      %1596 = vmatpush2.msra.mxu0 0.0
      %1597 = vmatprep.subr.mxu0 0.0
      %1598 = vmatpush2.msra.mxu0 0.0
      %1599 = vmatprep.subr.mxu0 0.0
      %1600 = vmatpush2.msra.mxu0 0.0
      %1601 = vmatprep.subr.mxu0 0.0
      %1602 = vmatpush2.msra.mxu0 0.0
      %1603 = vmatprep.subr.mxu0 0.0
      %1604 = vmatpush2.msra.mxu0 0.0
      %1605 = vmatprep.subr.mxu0 0.0
      %1606 = vmatpush2.msra.mxu0 0.0
      %1607 = vmatprep.subr.mxu0 0.0
      %1608 = vmatpush2.msra.mxu0 0.0
      %1609 = vmatprep.subr.mxu0 0.0
      %1610 = vmatpush2.msra.mxu0 0.0
      %1611 = vmatprep.subr.mxu0 0.0
      %1612 = vmatpush2.msra.mxu0 0.0
      %1613 = vmatprep.subr.mxu0 0.0
      %1614 = vmatpush2.msra.mxu0 0.0
      %1615 = vmatprep.subr.mxu0 0.0
      %1616 = vmatpush2.msra.mxu0 0.0
      %1617 = vmatprep.subr.mxu0 0.0
      %1618 = vmatpush2.msra.mxu0 0.0
      %1619 = vmatprep.subr.mxu0 0.0
      %1620 = vmatpush2.msra.mxu0 0.0
      %1621 = vmatprep.subr.mxu0 0.0
      %1622 = vmatpush2.msra.mxu0 0.0
      %1623 = vmatprep.subr.mxu0 0.0
      %1624 = vmatpush2.msra.mxu0 0.0
      %1625 = vmatprep.mubr.f32.mxu0 0.0
      %v1626 = vand.u32 %v1216, 4294901760
      %v1627 = vsub.f32 %v1216, %v1626
      %1628 = vmatmul.mubr.f32.gmra.mxu0 %v1627
      %v1629 = vpop.f32.mrf.mxu0
      %v1630 = vadd.f32 %v1500, %v1629
      %v1631 = vpop.f32.mrf.mxu0
      %1632 = vmatprep.mubr.f32.mxu0 0.0
      %v1633 = vand.u32 %v1219, 4294901760
      %v1634 = vsub.f32 %v1219, %v1633
      %1635 = vmatmul.mubr.f32.gmra.mxu0 %v1634
      %v1636 = vpop.f32.mrf.mxu0
      %v1637 = vadd.f32 %v1506, %v1636
      %v1638 = vpop.f32.mrf.mxu0
      %1639 = vmatprep.mubr.f32.mxu0 0.0
      %v1640 = vand.u32 %v1222, 4294901760
      %v1641 = vsub.f32 %v1222, %v1640
      %1642 = vmatmul.mubr.f32.gmra.mxu0 %v1641
      %v1643 = vpop.f32.mrf.mxu0
      %v1644 = vadd.f32 %v1512, %v1643
      %v1645 = vpop.f32.mrf.mxu0
      %1646 = vmatprep.mubr.f32.mxu0 0.0
      %v1647 = vand.u32 %v1225, 4294901760
      %v1648 = vsub.f32 %v1225, %v1647
      %1649 = vmatmul.mubr.f32.gmra.mxu0 %v1648
      %v1650 = vpop.f32.mrf.mxu0
      %v1651 = vadd.f32 %v1518, %v1650
      %v1652 = vpop.f32.mrf.mxu0
      %1653 = vmatprep.mubr.f32.mxu0 0.0
      %v1654 = vand.u32 %v1228, 4294901760
      %v1655 = vsub.f32 %v1228, %v1654
      %1656 = vmatmul.mubr.f32.gmra.mxu0 %v1655
      %v1657 = vpop.f32.mrf.mxu0
      %v1658 = vadd.f32 %v1524, %v1657
      %v1659 = vpop.f32.mrf.mxu0
      %1660 = vmatprep.mubr.f32.mxu0 0.0
      %v1661 = vand.u32 %v1231, 4294901760
      %v1662 = vsub.f32 %v1231, %v1661
      %1663 = vmatmul.mubr.f32.gmra.mxu0 %v1662
      %v1664 = vpop.f32.mrf.mxu0
      %v1665 = vadd.f32 %v1530, %v1664
      %v1666 = vpop.f32.mrf.mxu0
      %1667 = vmatprep.mubr.f32.mxu0 0.0
      %v1668 = vand.u32 %v1234, 4294901760
      %v1669 = vsub.f32 %v1234, %v1668
      %1670 = vmatmul.mubr.f32.gmra.mxu0 %v1669
      %v1671 = vpop.f32.mrf.mxu0
      %v1672 = vadd.f32 %v1536, %v1671
      %v1673 = vpop.f32.mrf.mxu0
      %1674 = vmatprep.mubr.f32.mxu0 0.0
      %v1675 = vand.u32 %v1237, 4294901760
      %v1676 = vsub.f32 %v1237, %v1675
      %1677 = vmatmul.mubr.f32.gmra.mxu0 %v1676
      %v1678 = vpop.f32.mrf.mxu0
      %v1679 = vadd.f32 %v1542, %v1678
      %v1680 = vpop.f32.mrf.mxu0
      %1681 = vdwg.mxu0
      %1682 = vmatprep.subr.mxu0 0.0
      %1683 = vmatpush1.msra.mxu0 0.0
      %1684 = vmatprep.subr.mxu0 0.0
      %1685 = vmatpush1.msra.mxu0 0.0
      %1686 = vmatprep.subr.mxu0 0.0
      %1687 = vmatpush1.msra.mxu0 0.0
      %1688 = vmatprep.subr.mxu0 0.0
      %1689 = vmatpush1.msra.mxu0 0.0
      %1690 = vmatprep.subr.mxu0 0.0
      %1691 = vmatpush1.msra.mxu0 0.0
      %1692 = vmatprep.subr.mxu0 0.0
      %1693 = vmatpush1.msra.mxu0 0.0
      %1694 = vmatprep.subr.mxu0 0.0
      %1695 = vmatpush1.msra.mxu0 0.0
      %1696 = vmatprep.subr.mxu0 0.0
      %1697 = vmatpush1.msra.mxu0 0.0
      %1698 = vmatprep.subr.mxu0 0.0
      %v1699 = vand.u32 %v246, 4294901760
      %1700 = vmatpush1.msra.mxu0 %v1699
      %1701 = vmatprep.subr.mxu0 0.0
      %v1702 = vand.u32 %v245, 4294901760
      %1703 = vmatpush1.msra.mxu0 %v1702
      %1704 = vmatprep.subr.mxu0 0.0
      %v1705 = vand.u32 %v244, 4294901760
      %1706 = vmatpush1.msra.mxu0 %v1705
      %1707 = vmatprep.subr.mxu0 0.0
      %v1708 = vand.u32 %v243, 4294901760
      %1709 = vmatpush1.msra.mxu0 %v1708
      %1710 = vmatprep.subr.mxu0 0.0
      %v1711 = vand.u32 %v242, 4294901760
      %1712 = vmatpush1.msra.mxu0 %v1711
      %1713 = vmatprep.subr.mxu0 0.0
      %v1714 = vand.u32 %v241, 4294901760
      %1715 = vmatpush1.msra.mxu0 %v1714
      %1716 = vmatprep.subr.mxu0 0.0
      %v1717 = vand.u32 %v240, 4294901760
      %1718 = vmatpush1.msra.mxu0 %v1717
      %1719 = vmatprep.subr.mxu0 0.0
      %v1720 = vand.u32 %v239, 4294901760
      %1721 = vmatpush1.msra.mxu0 %v1720
      %1722 = vmatprep.subr.mxu0 0.0
      %1723 = vmatpush2.msra.mxu0 0.0
      %1724 = vmatprep.subr.mxu0 0.0
      %1725 = vmatpush2.msra.mxu0 0.0
      %1726 = vmatprep.subr.mxu0 0.0
      %1727 = vmatpush2.msra.mxu0 0.0
      %1728 = vmatprep.subr.mxu0 0.0
      %1729 = vmatpush2.msra.mxu0 0.0
      %1730 = vmatprep.subr.mxu0 0.0
      %1731 = vmatpush2.msra.mxu0 0.0
      %1732 = vmatprep.subr.mxu0 0.0
      %1733 = vmatpush2.msra.mxu0 0.0
      %1734 = vmatprep.subr.mxu0 0.0
      %1735 = vmatpush2.msra.mxu0 0.0
      %1736 = vmatprep.subr.mxu0 0.0
      %1737 = vmatpush2.msra.mxu0 0.0
      %1738 = vmatprep.subr.mxu0 0.0
      %1739 = vmatpush2.msra.mxu0 0.0
      %1740 = vmatprep.subr.mxu0 0.0
      %1741 = vmatpush2.msra.mxu0 0.0
      %1742 = vmatprep.subr.mxu0 0.0
      %1743 = vmatpush2.msra.mxu0 0.0
      %1744 = vmatprep.subr.mxu0 0.0
      %1745 = vmatpush2.msra.mxu0 0.0
      %1746 = vmatprep.subr.mxu0 0.0
      %1747 = vmatpush2.msra.mxu0 0.0
      %1748 = vmatprep.subr.mxu0 0.0
      %1749 = vmatpush2.msra.mxu0 0.0
      %1750 = vmatprep.subr.mxu0 0.0
      %1751 = vmatpush2.msra.mxu0 0.0
      %1752 = vmatprep.subr.mxu0 0.0
      %1753 = vmatpush2.msra.mxu0 0.0
      %1754 = vmatprep.mubr.f32.mxu0 0.0
      %v1755 = vand.u32 %v1216, 4294901760
      %v1756 = vsub.f32 %v1216, %v1755
      %v1757 = vand.u32 %v1756, 4294901760
      %1758 = vmatmul.mubr.f32.gmra.mxu0 %v1757
      %v1759 = vpop.f32.mrf.mxu0
      %v1760 = vadd.f32 %v1630, %v1759
      %v1761 = vpop.f32.mrf.mxu0
      %1762 = vmatprep.mubr.f32.mxu0 0.0
      %v1763 = vand.u32 %v1219, 4294901760
      %v1764 = vsub.f32 %v1219, %v1763
      %v1765 = vand.u32 %v1764, 4294901760
      %1766 = vmatmul.mubr.f32.gmra.mxu0 %v1765
      %v1767 = vpop.f32.mrf.mxu0
      %v1768 = vadd.f32 %v1637, %v1767
      %v1769 = vpop.f32.mrf.mxu0
      %1770 = vmatprep.mubr.f32.mxu0 0.0
      %v1771 = vand.u32 %v1222, 4294901760
      %v1772 = vsub.f32 %v1222, %v1771
      %v1773 = vand.u32 %v1772, 4294901760
      %1774 = vmatmul.mubr.f32.gmra.mxu0 %v1773
      %v1775 = vpop.f32.mrf.mxu0
      %v1776 = vadd.f32 %v1644, %v1775
      %v1777 = vpop.f32.mrf.mxu0
      %1778 = vmatprep.mubr.f32.mxu0 0.0
      %v1779 = vand.u32 %v1225, 4294901760
      %v1780 = vsub.f32 %v1225, %v1779
      %v1781 = vand.u32 %v1780, 4294901760
      %1782 = vmatmul.mubr.f32.gmra.mxu0 %v1781
      %v1783 = vpop.f32.mrf.mxu0
      %v1784 = vadd.f32 %v1651, %v1783
      %v1785 = vpop.f32.mrf.mxu0
      %1786 = vmatprep.mubr.f32.mxu0 0.0
      %v1787 = vand.u32 %v1228, 4294901760
      %v1788 = vsub.f32 %v1228, %v1787
      %v1789 = vand.u32 %v1788, 4294901760
      %1790 = vmatmul.mubr.f32.gmra.mxu0 %v1789
      %v1791 = vpop.f32.mrf.mxu0
      %v1792 = vadd.f32 %v1658, %v1791
      %v1793 = vpop.f32.mrf.mxu0
      %1794 = vmatprep.mubr.f32.mxu0 0.0
      %v1795 = vand.u32 %v1231, 4294901760
      %v1796 = vsub.f32 %v1231, %v1795
      %v1797 = vand.u32 %v1796, 4294901760
      %1798 = vmatmul.mubr.f32.gmra.mxu0 %v1797
      %v1799 = vpop.f32.mrf.mxu0
      %v1800 = vadd.f32 %v1665, %v1799
      %v1801 = vpop.f32.mrf.mxu0
      %1802 = vmatprep.mubr.f32.mxu0 0.0
      %v1803 = vand.u32 %v1234, 4294901760
      %v1804 = vsub.f32 %v1234, %v1803
      %v1805 = vand.u32 %v1804, 4294901760
      %1806 = vmatmul.mubr.f32.gmra.mxu0 %v1805
      %v1807 = vpop.f32.mrf.mxu0
      %v1808 = vadd.f32 %v1672, %v1807
      %v1809 = vpop.f32.mrf.mxu0
      %1810 = vmatprep.mubr.f32.mxu0 0.0
      %v1811 = vand.u32 %v1237, 4294901760
      %v1812 = vsub.f32 %v1237, %v1811
      %v1813 = vand.u32 %v1812, 4294901760
      %1814 = vmatmul.mubr.f32.gmra.mxu0 %v1813
      %v1815 = vpop.f32.mrf.mxu0
      %v1816 = vadd.f32 %v1679, %v1815
      %v1817 = vpop.f32.mrf.mxu0
      %1818 = vdwg.mxu0
      %1819 = vmatprep.subr.mxu0 0.0
      %1820 = vmatpush1.msra.mxu0 0.0
      %1821 = vmatprep.subr.mxu0 0.0
      %1822 = vmatpush1.msra.mxu0 0.0
      %1823 = vmatprep.subr.mxu0 0.0
      %1824 = vmatpush1.msra.mxu0 0.0
      %1825 = vmatprep.subr.mxu0 0.0
      %1826 = vmatpush1.msra.mxu0 0.0
      %1827 = vmatprep.subr.mxu0 0.0
      %1828 = vmatpush1.msra.mxu0 0.0
      %1829 = vmatprep.subr.mxu0 0.0
      %1830 = vmatpush1.msra.mxu0 0.0
      %1831 = vmatprep.subr.mxu0 0.0
      %1832 = vmatpush1.msra.mxu0 0.0
      %1833 = vmatprep.subr.mxu0 0.0
      %1834 = vmatpush1.msra.mxu0 0.0
      %1835 = vmatprep.subr.mxu0 0.0
      %v1836 = vand.u32 %v246, 4294901760
      %v1837 = vsub.f32 %v246, %v1836
      %v1838 = vand.u32 %v1837, 4294901760
      %1839 = vmatpush1.msra.mxu0 %v1838
      %1840 = vmatprep.subr.mxu0 0.0
      %v1841 = vand.u32 %v245, 4294901760
      %v1842 = vsub.f32 %v245, %v1841
      %v1843 = vand.u32 %v1842, 4294901760
      %1844 = vmatpush1.msra.mxu0 %v1843
      %1845 = vmatprep.subr.mxu0 0.0
      %v1846 = vand.u32 %v244, 4294901760
      %v1847 = vsub.f32 %v244, %v1846
      %v1848 = vand.u32 %v1847, 4294901760
      %1849 = vmatpush1.msra.mxu0 %v1848
      %1850 = vmatprep.subr.mxu0 0.0
      %v1851 = vand.u32 %v243, 4294901760
      %v1852 = vsub.f32 %v243, %v1851
      %v1853 = vand.u32 %v1852, 4294901760
      %1854 = vmatpush1.msra.mxu0 %v1853
      %1855 = vmatprep.subr.mxu0 0.0
      %v1856 = vand.u32 %v242, 4294901760
      %v1857 = vsub.f32 %v242, %v1856
      %v1858 = vand.u32 %v1857, 4294901760
      %1859 = vmatpush1.msra.mxu0 %v1858
      %1860 = vmatprep.subr.mxu0 0.0
      %v1861 = vand.u32 %v241, 4294901760
      %v1862 = vsub.f32 %v241, %v1861
      %v1863 = vand.u32 %v1862, 4294901760
      %1864 = vmatpush1.msra.mxu0 %v1863
      %1865 = vmatprep.subr.mxu0 0.0
      %v1866 = vand.u32 %v240, 4294901760
      %v1867 = vsub.f32 %v240, %v1866
      %v1868 = vand.u32 %v1867, 4294901760
      %1869 = vmatpush1.msra.mxu0 %v1868
      %1870 = vmatprep.subr.mxu0 0.0
      %v1871 = vand.u32 %v239, 4294901760
      %v1872 = vsub.f32 %v239, %v1871
      %v1873 = vand.u32 %v1872, 4294901760
      %1874 = vmatpush1.msra.mxu0 %v1873
      %1875 = vmatprep.subr.mxu0 0.0
      %1876 = vmatpush2.msra.mxu0 0.0
      %1877 = vmatprep.subr.mxu0 0.0
      %1878 = vmatpush2.msra.mxu0 0.0
      %1879 = vmatprep.subr.mxu0 0.0
      %1880 = vmatpush2.msra.mxu0 0.0
      %1881 = vmatprep.subr.mxu0 0.0
      %1882 = vmatpush2.msra.mxu0 0.0
      %1883 = vmatprep.subr.mxu0 0.0
      %1884 = vmatpush2.msra.mxu0 0.0
      %1885 = vmatprep.subr.mxu0 0.0
      %1886 = vmatpush2.msra.mxu0 0.0
      %1887 = vmatprep.subr.mxu0 0.0
      %1888 = vmatpush2.msra.mxu0 0.0
      %1889 = vmatprep.subr.mxu0 0.0
      %1890 = vmatpush2.msra.mxu0 0.0
      %1891 = vmatprep.subr.mxu0 0.0
      %1892 = vmatpush2.msra.mxu0 0.0
      %1893 = vmatprep.subr.mxu0 0.0
      %1894 = vmatpush2.msra.mxu0 0.0
      %1895 = vmatprep.subr.mxu0 0.0
      %1896 = vmatpush2.msra.mxu0 0.0
      %1897 = vmatprep.subr.mxu0 0.0
      %1898 = vmatpush2.msra.mxu0 0.0
      %1899 = vmatprep.subr.mxu0 0.0
      %1900 = vmatpush2.msra.mxu0 0.0
      %1901 = vmatprep.subr.mxu0 0.0
      %1902 = vmatpush2.msra.mxu0 0.0
      %1903 = vmatprep.subr.mxu0 0.0
      %1904 = vmatpush2.msra.mxu0 0.0
      %1905 = vmatprep.subr.mxu0 0.0
      %1906 = vmatpush2.msra.mxu0 0.0
      %1907 = vmatprep.mubr.f32.mxu0 0.0
      %v1908 = vand.u32 %v1216, 4294901760
      %1909 = vmatmul.mubr.f32.gmra.mxu0 %v1908
      %v1910 = vpop.f32.mrf.mxu0
      %v1911 = vadd.f32 %v1760, %v1910
      %v1912 = vpop.f32.mrf.mxu0
      %1913 = vmatprep.mubr.f32.mxu0 0.0
      %v1914 = vand.u32 %v1219, 4294901760
      %1915 = vmatmul.mubr.f32.gmra.mxu0 %v1914
      %v1916 = vpop.f32.mrf.mxu0
      %v1917 = vadd.f32 %v1768, %v1916
      %v1918 = vpop.f32.mrf.mxu0
      %1919 = vmatprep.mubr.f32.mxu0 0.0
      %v1920 = vand.u32 %v1222, 4294901760
      %1921 = vmatmul.mubr.f32.gmra.mxu0 %v1920
      %v1922 = vpop.f32.mrf.mxu0
      %v1923 = vadd.f32 %v1776, %v1922
      %v1924 = vpop.f32.mrf.mxu0
      %1925 = vmatprep.mubr.f32.mxu0 0.0
      %v1926 = vand.u32 %v1225, 4294901760
      %1927 = vmatmul.mubr.f32.gmra.mxu0 %v1926
      %v1928 = vpop.f32.mrf.mxu0
      %v1929 = vadd.f32 %v1784, %v1928
      %v1930 = vpop.f32.mrf.mxu0
      %1931 = vmatprep.mubr.f32.mxu0 0.0
      %v1932 = vand.u32 %v1228, 4294901760
      %1933 = vmatmul.mubr.f32.gmra.mxu0 %v1932
      %v1934 = vpop.f32.mrf.mxu0
      %v1935 = vadd.f32 %v1792, %v1934
      %v1936 = vpop.f32.mrf.mxu0
      %1937 = vmatprep.mubr.f32.mxu0 0.0
      %v1938 = vand.u32 %v1231, 4294901760
      %1939 = vmatmul.mubr.f32.gmra.mxu0 %v1938
      %v1940 = vpop.f32.mrf.mxu0
      %v1941 = vadd.f32 %v1800, %v1940
      %v1942 = vpop.f32.mrf.mxu0
      %1943 = vmatprep.mubr.f32.mxu0 0.0
      %v1944 = vand.u32 %v1234, 4294901760
      %1945 = vmatmul.mubr.f32.gmra.mxu0 %v1944
      %v1946 = vpop.f32.mrf.mxu0
      %v1947 = vadd.f32 %v1808, %v1946
      %v1948 = vpop.f32.mrf.mxu0
      %1949 = vmatprep.mubr.f32.mxu0 0.0
      %v1950 = vand.u32 %v1237, 4294901760
      %1951 = vmatmul.mubr.f32.gmra.mxu0 %v1950
      %v1952 = vpop.f32.mrf.mxu0
      %v1953 = vadd.f32 %v1816, %v1952
      %v1954 = vpop.f32.mrf.mxu0
      %1955 = vdwg.mxu0
      %1956 = vmatprep.subr.mxu0 0.0
      %1957 = vmatpush1.msra.mxu0 0.0
      %1958 = vmatprep.subr.mxu0 0.0
      %1959 = vmatpush1.msra.mxu0 0.0
      %1960 = vmatprep.subr.mxu0 0.0
      %1961 = vmatpush1.msra.mxu0 0.0
      %1962 = vmatprep.subr.mxu0 0.0
      %1963 = vmatpush1.msra.mxu0 0.0
      %1964 = vmatprep.subr.mxu0 0.0
      %1965 = vmatpush1.msra.mxu0 0.0
      %1966 = vmatprep.subr.mxu0 0.0
      %1967 = vmatpush1.msra.mxu0 0.0
      %1968 = vmatprep.subr.mxu0 0.0
      %1969 = vmatpush1.msra.mxu0 0.0
      %1970 = vmatprep.subr.mxu0 0.0
      %1971 = vmatpush1.msra.mxu0 0.0
      %1972 = vmatprep.subr.mxu0 0.0
      %v1973 = vand.u32 %v246, 4294901760
      %1974 = vmatpush1.msra.mxu0 %v1973
      %1975 = vmatprep.subr.mxu0 0.0
      %v1976 = vand.u32 %v245, 4294901760
      %1977 = vmatpush1.msra.mxu0 %v1976
      %1978 = vmatprep.subr.mxu0 0.0
      %v1979 = vand.u32 %v244, 4294901760
      %1980 = vmatpush1.msra.mxu0 %v1979
      %1981 = vmatprep.subr.mxu0 0.0
      %v1982 = vand.u32 %v243, 4294901760
      %1983 = vmatpush1.msra.mxu0 %v1982
      %1984 = vmatprep.subr.mxu0 0.0
      %v1985 = vand.u32 %v242, 4294901760
      %1986 = vmatpush1.msra.mxu0 %v1985
      %1987 = vmatprep.subr.mxu0 0.0
      %v1988 = vand.u32 %v241, 4294901760
      %1989 = vmatpush1.msra.mxu0 %v1988
      %1990 = vmatprep.subr.mxu0 0.0
      %v1991 = vand.u32 %v240, 4294901760
      %1992 = vmatpush1.msra.mxu0 %v1991
      %1993 = vmatprep.subr.mxu0 0.0
      %v1994 = vand.u32 %v239, 4294901760
      %1995 = vmatpush1.msra.mxu0 %v1994
      %1996 = vmatprep.subr.mxu0 0.0
      %1997 = vmatpush2.msra.mxu0 0.0
      %1998 = vmatprep.subr.mxu0 0.0
      %1999 = vmatpush2.msra.mxu0 0.0
      %2000 = vmatprep.subr.mxu0 0.0
      %2001 = vmatpush2.msra.mxu0 0.0
      %2002 = vmatprep.subr.mxu0 0.0
      %2003 = vmatpush2.msra.mxu0 0.0
      %2004 = vmatprep.subr.mxu0 0.0
      %2005 = vmatpush2.msra.mxu0 0.0
      %2006 = vmatprep.subr.mxu0 0.0
      %2007 = vmatpush2.msra.mxu0 0.0
      %2008 = vmatprep.subr.mxu0 0.0
      %2009 = vmatpush2.msra.mxu0 0.0
      %2010 = vmatprep.subr.mxu0 0.0
      %2011 = vmatpush2.msra.mxu0 0.0
      %2012 = vmatprep.subr.mxu0 0.0
      %2013 = vmatpush2.msra.mxu0 0.0
      %2014 = vmatprep.subr.mxu0 0.0
      %2015 = vmatpush2.msra.mxu0 0.0
      %2016 = vmatprep.subr.mxu0 0.0
      %2017 = vmatpush2.msra.mxu0 0.0
      %2018 = vmatprep.subr.mxu0 0.0
      %2019 = vmatpush2.msra.mxu0 0.0
      %2020 = vmatprep.subr.mxu0 0.0
      %2021 = vmatpush2.msra.mxu0 0.0
      %2022 = vmatprep.subr.mxu0 0.0
      %2023 = vmatpush2.msra.mxu0 0.0
      %2024 = vmatprep.subr.mxu0 0.0
      %2025 = vmatpush2.msra.mxu0 0.0
      %2026 = vmatprep.subr.mxu0 0.0
      %2027 = vmatpush2.msra.mxu0 0.0
      %2028 = vmatprep.mubr.f32.mxu0 0.0
      %v2029 = vand.u32 %v1216, 4294901760
      %2030 = vmatmul.mubr.f32.gmra.mxu0 %v2029
      %v2031 = vpop.f32.mrf.mxu0
      %v2032 = vadd.f32 %v1911, %v2031
      %v2033 = vpop.f32.mrf.mxu0
      %2034 = vmatprep.mubr.f32.mxu0 0.0
      %v2035 = vand.u32 %v1219, 4294901760
      %2036 = vmatmul.mubr.f32.gmra.mxu0 %v2035
      %v2037 = vpop.f32.mrf.mxu0
      %v2038 = vadd.f32 %v1917, %v2037
      %v2039 = vpop.f32.mrf.mxu0
      %2040 = vmatprep.mubr.f32.mxu0 0.0
      %v2041 = vand.u32 %v1222, 4294901760
      %2042 = vmatmul.mubr.f32.gmra.mxu0 %v2041
      %v2043 = vpop.f32.mrf.mxu0
      %v2044 = vadd.f32 %v1923, %v2043
      %v2045 = vpop.f32.mrf.mxu0
      %2046 = vmatprep.mubr.f32.mxu0 0.0
      %v2047 = vand.u32 %v1225, 4294901760
      %2048 = vmatmul.mubr.f32.gmra.mxu0 %v2047
      %v2049 = vpop.f32.mrf.mxu0
      %v2050 = vadd.f32 %v1929, %v2049
      %v2051 = vpop.f32.mrf.mxu0
      %2052 = vmatprep.mubr.f32.mxu0 0.0
      %v2053 = vand.u32 %v1228, 4294901760
      %2054 = vmatmul.mubr.f32.gmra.mxu0 %v2053
      %v2055 = vpop.f32.mrf.mxu0
      %v2056 = vadd.f32 %v1935, %v2055
      %v2057 = vpop.f32.mrf.mxu0
      %2058 = vmatprep.mubr.f32.mxu0 0.0
      %v2059 = vand.u32 %v1231, 4294901760
      %2060 = vmatmul.mubr.f32.gmra.mxu0 %v2059
      %v2061 = vpop.f32.mrf.mxu0
      %v2062 = vadd.f32 %v1941, %v2061
      %v2063 = vpop.f32.mrf.mxu0
      %2064 = vmatprep.mubr.f32.mxu0 0.0
      %v2065 = vand.u32 %v1234, 4294901760
      %2066 = vmatmul.mubr.f32.gmra.mxu0 %v2065
      %v2067 = vpop.f32.mrf.mxu0
      %v2068 = vadd.f32 %v1947, %v2067
      %v2069 = vpop.f32.mrf.mxu0
      %2070 = vmatprep.mubr.f32.mxu0 0.0
      %v2071 = vand.u32 %v1237, 4294901760
      %2072 = vmatmul.mubr.f32.gmra.mxu0 %v2071
      %v2073 = vpop.f32.mrf.mxu0
      %v2074 = vadd.f32 %v1953, %v2073
      %v2075 = vpop.f32.mrf.mxu0
      %2076 = vdwg.mxu0
      %s2077 = sld [smem:[#allocation2]]
      %v2078 = vstv %s2077
      %v2079 = vmul.f32 %v2078, %v2032
      %v2080 = vmul.f32 %v2078, %v2038
      %v2081 = vmul.f32 %v2078, %v2044
      %v2082 = vmul.f32 %v2078, %v2050
      %v2083 = vmul.f32 %v2078, %v2056
      %v2084 = vmul.f32 %v2078, %v2062
      %v2085 = vmul.f32 %v2078, %v2068
      %v2086 = vmul.f32 %v2078, %v2074
      %v2087 = vadd.f32 %v2079, %v231
      %v2088 = vadd.f32 %v2080, %v232
      %v2089 = vadd.f32 %v2081, %v233
      %v2090 = vadd.f32 %v2082, %v234
      %v2091 = vadd.f32 %v2083, %v235
      %v2092 = vadd.f32 %v2084, %v236
      %v2093 = vadd.f32 %v2085, %v237
      %v2094 = vadd.f32 %v2086, %v238
      %2095 = vst.msk [vmem:[%s229] sm:$0xff] %vm247, %v2087
      %2096 = vst.msk [vmem:[%s229 + $0x8] sm:$0xff] %vm247, %v2088
      %2097 = vst.msk [vmem:[%s229 + $0x10] sm:$0xff] %vm247, %v2089
      %2098 = vst.msk [vmem:[%s229 + $0x18] sm:$0xff] %vm247, %v2090
      %2099 = vst.msk [vmem:[%s229 + $0x20] sm:$0xff] %vm247, %v2091
      %2100 = vst.msk [vmem:[%s229 + $0x28] sm:$0xff] %vm247, %v2092
      %2101 = vst.msk [vmem:[%s229 + $0x30] sm:$0xff] %vm247, %v2093
      %2102 = vst.msk [vmem:[%s229 + $0x38] sm:$0xff] %vm247, %v2094
      %s2103 = smul.u32 8, %s20
      %p2104 = scmp.lt.s32.totalorder %s19, 1
      %s2105 = scalar_select %p2104, %s19, 1
      %p2106 = scmp.lt.s32.totalorder %s2103, 7
      %s2107 = scalar_select %p2106, %s2103, 7
      %s2108 = smul.addr %s2105, 8
      %s2109 = sadd.s32 %s2107, %s2108
      %s2110 = smul.addr %s2109, 8
      %s2111 = scalar_lea.vmem %s3, %s2110
      // Predicated region
      $region33: #{tpu_custom_call.1} parent=31 // pred_check
        %p2112 = pneg %p122
      $region34: #{tpu_custom_call.1} parent=31 // pred_check_branch
        %2114 = sbr.rel (%p2112) target = $region36
      $region35: #{tpu_custom_call.1} parent=31 // pred_region
        %s2115 = smul.u32 8, %s20
      $region36: #{tpu_custom_call.1} parent=31 // pred_fallthru
        _
    $region32: #{tpu_custom_call.1} parent=5 // pred_fallthru
      _
    %p2116 = scmp.le.s32.totalorder 2, %s10
    // Predicated region
    $region37: #{tpu_custom_call.1} parent=5 // pred_check
      %p2117 = pneg %p2116
    $region38: #{tpu_custom_call.1} parent=5 // pred_check_branch
      %2119 = sbr.rel (%p2117) target = $region40
    $region39: #{tpu_custom_call.1} parent=5 // pred_region
      %s2120 = ssub.s32 %s10, 2
      // Predicated region
      $region41: #{tpu_custom_call.1} parent=39 // pred_check
        %p2121 = pneg %p128
      $region42: #{tpu_custom_call.1} parent=39 // pred_check_branch
        %2123 = sbr.rel (%p2121) target = $region44
      $region43: #{tpu_custom_call.1} parent=39 // pred_region
        %s2124 = smul.u32 8, %s22
        %p2125 = scmp.lt.s32.totalorder %s21, 1
        %s2126 = scalar_select %p2125, %s21, 1
        %p2127 = scmp.lt.s32.totalorder %s2124, 7
        %s2128 = scalar_select %p2127, %s2124, 7
        %s2129 = smul.addr %s2126, 8
        %s2130 = sadd.s32 %s2128, %s2129
        %s2131 = smul.addr %s2130, 8
        %s2132 = scalar_lea.vmem %s3, %s2131
      $region44: #{tpu_custom_call.1} parent=39 // pred_fallthru
        _
    $region40: #{tpu_custom_call.1} parent=5 // pred_fallthru
      _
  $region6: #{tpu_custom_call.1} parent=0 // loop_footer
    %s14 = sadd.s32 1, %s10
  $region7: #{tpu_custom_call.1} parent=0 // loop_footer_branch
    %9 = sbr.rel target = $region3
  $region8: #{tpu_custom_call.1} parent=0 // loop_exit
    _

</llo_original>
